<compile_context>
chip_gen: v5e
topology: v5e:2x2
jax: 0.10.0
libtpu: 0.0.40
codegen_flags: <defaults>
</compile_context>

<pallas_src>
import functools

import jax
import jax.numpy as jnp
from jax.experimental import pallas as pl
from jax.experimental.pallas import tpu as pltpu

BN_EPS = 1e-5
L2_EPS = 1e-12


def hetero_general_layer_kernel(a_ref, x_ref, w_ref, w1_ref, b1_ref, w2_ref,
                                bng_ref, bnb_ref, out_ref, z_ref, s_ref):
    r = pl.program_id(0)

    # --- per-relation GCN-style conv:  Z[r] = A_norm[r] @ (X_src[r] @ W[r]) ---
    # bf16 operands, f32 accumulation on the MXU.
    xw = jnp.dot(x_ref[...], w_ref[...], preferred_element_type=jnp.float32)
    z = jnp.dot(a_ref[...], xw.astype(jnp.bfloat16),
                preferred_element_type=jnp.float32)                 # [N, Dp] f32
    z_ref[r] = z

    # --- semantic-attention projection for this relation (inside the pipelined
    #     loop so the [N,Dp]x[Dp,H] MXU work overlaps the next relation's DMA) ---
    h = jnp.tanh(jnp.dot(z.astype(jnp.bfloat16), w1_ref[...],
                         preferred_element_type=jnp.float32) + b1_ref[...])  # [N, Hp]
    s_ref[r] = jnp.sum(h * w2_ref[...], axis=-1, keepdims=True)     # [N, 1]

    @pl.when(r == pl.num_programs(0) - 1)
    def _finalize():
        n_rel = z_ref.shape[0]

        # --- softmax over the per-relation scores (mean over nodes) ---
        scores = [jnp.mean(s_ref[rr], axis=0, keepdims=True)        # each [1, 1]
                  for rr in range(n_rel)]
        s_max = functools.reduce(jnp.maximum, scores)
        exps = [jnp.exp(sc - s_max) for sc in scores]
        denom = functools.reduce(lambda a, b: a + b, exps)
        inv = pl.reciprocal(denom, approx=True)                     # EUP slot

        agg = exps[0] * inv * z_ref[0]
        for rr in range(1, n_rel):
            agg = agg + exps[rr] * inv * z_ref[rr]                  # [N, Dp] f32

        # --- BatchNorm1d (training-mode batch statistics, biased variance) ---
        mu = jnp.mean(agg, axis=0, keepdims=True)
        var = jnp.mean((agg - mu) ** 2, axis=0, keepdims=True)
        y = (agg - mu) * jax.lax.rsqrt(var + BN_EPS)
        y = y * bng_ref[...] + bnb_ref[...]

        # --- activation (ReLU) ---
        y = jnp.maximum(y, 0.0)

        # --- L2 normalize (F.normalize, dim=-1):
        #     y / max(||y||, eps) == y * rsqrt(max(sumsq, eps^2)) ---
        sumsq = jnp.sum(y * y, axis=-1, keepdims=True)
        out_ref[...] = y * jax.lax.rsqrt(jnp.maximum(sumsq, L2_EPS * L2_EPS))


def _pad_axis(a, axis, mult):
    size = a.shape[axis]
    pad = (-size) % mult
    if pad == 0:
        return a
    widths = [(0, 0)] * a.ndim
    widths[axis] = (0, pad)
    return jnp.pad(a, widths)


def hetero_general_layer(a_norm, x_src, w_rel, w1, b1, w2, gamma, bn_beta):
    R, n_dst, n_src = a_norm.shape
    d_out = w_rel.shape[-1]

    # Lane-dense padding of feature axes (zeros are exactly neutral through the
    # whole pipeline) + bf16 cast of the big matmul streams.
    a_p = a_norm.astype(jnp.bfloat16)
    x_p = _pad_axis(x_src, -1, 128).astype(jnp.bfloat16)
    w_p = _pad_axis(_pad_axis(w_rel, -2, 128), -1, 128).astype(jnp.bfloat16)
    w1_p = _pad_axis(_pad_axis(w1, 0, 128), 1, 128).astype(jnp.bfloat16)
    b1_p = _pad_axis(b1, -1, 128)
    w2_p = _pad_axis(w2, -1, 128)
    g_p = _pad_axis(gamma, -1, 128)
    bb_p = _pad_axis(bn_beta, -1, 128)

    d_in_p = x_p.shape[-1]
    d_out_p = w_p.shape[-1]
    hid_p = w1_p.shape[-1]

    out_p = pl.pallas_call(
        hetero_general_layer_kernel,
        out_shape=jax.ShapeDtypeStruct((n_dst, d_out_p), jnp.float32),
        grid_spec=pltpu.PrefetchScalarGridSpec(
            num_scalar_prefetch=0,
            grid=(R,),
            in_specs=[
                pl.BlockSpec((pl.Squeezed(), n_dst, n_src), lambda r: (r, 0, 0)),   # A_norm[r]
                pl.BlockSpec((pl.Squeezed(), n_src, d_in_p), lambda r: (r, 0, 0)),  # X_src[r]
                pl.BlockSpec((pl.Squeezed(), d_in_p, d_out_p), lambda r: (r, 0, 0)),  # W_rel[r]
                pl.BlockSpec((d_out_p, hid_p), lambda r: (0, 0)),                   # attn W1
                pl.BlockSpec((1, hid_p), lambda r: (0, 0)),                         # attn b1
                pl.BlockSpec((1, hid_p), lambda r: (0, 0)),                         # attn W2
                pl.BlockSpec((1, d_out_p), lambda r: (0, 0)),                       # BN gamma
                pl.BlockSpec((1, d_out_p), lambda r: (0, 0)),                       # BN beta
            ],
            out_specs=pl.BlockSpec((n_dst, d_out_p), lambda r: (0, 0)),
            scratch_shapes=[
                pltpu.VMEM((R, n_dst, d_out_p), jnp.float32),   # per-relation Z
                pltpu.VMEM((R, n_dst, 1), jnp.float32),         # per-relation per-node scores
            ],
        ),
        compiler_params=pltpu.CompilerParams(
            dimension_semantics=("arbitrary",),
            vmem_limit_bytes=64 * 1024 * 1024,
        ),
    )(a_p, x_p, w_p, w1_p, b1_p, w2_p, g_p, bb_p)

    return out_p[:, :d_out]


def reference(a_norm, x_src, w_rel, w1, b1, w2, gamma, bn_beta):
    """Pure-JAX re-implementation mirroring the kernel's bf16/f32 mixed precision."""
    R = a_norm.shape[0]
    a16 = a_norm.astype(jnp.bfloat16)
    x16 = x_src.astype(jnp.bfloat16)
    wr16 = w_rel.astype(jnp.bfloat16)
    w116 = w1.astype(jnp.bfloat16)

    zs = []
    for r in range(R):
        xw = jnp.dot(x16[r], wr16[r], preferred_element_type=jnp.float32)
        zs.append(jnp.dot(a16[r], xw.astype(jnp.bfloat16),
                          preferred_element_type=jnp.float32))
    z = jnp.stack(zs, axis=1)                                       # [N, R, D]

    h = jnp.tanh(jnp.einsum('nrd,dh->nrh', z.astype(jnp.bfloat16), w116,
                            preferred_element_type=jnp.float32) + b1)
    s = (h * w2).sum(-1, keepdims=True)                             # [N, R, 1]
    w_score = s.mean(0)                                             # [R, 1]
    beta_att = jax.nn.softmax(w_score, axis=0)
    out = (beta_att[None] * z).sum(1)                               # [N, D]

    mu = out.mean(0, keepdims=True)
    var = ((out - mu) ** 2).mean(0, keepdims=True)
    y = (out - mu) / jnp.sqrt(var + BN_EPS) * gamma + bn_beta
    y = jnp.maximum(y, 0.0)
    nrm = jnp.sqrt((y * y).sum(-1, keepdims=True))
    return y / jnp.maximum(nrm, L2_EPS)


if __name__ == "__main__":
    key = jax.random.PRNGKey(0)
    R, n_dst, n_src, d_in, d_out, hidden = 3, 128, 128, 64, 96, 128
    keys = jax.random.split(key, 8)

    # deterministic synthetic heterogeneous graph (one dst type, R relations)
    adj = jax.random.bernoulli(keys[0], 0.3, (R, n_dst, n_src)).astype(jnp.float32)
    deg = jnp.maximum(adj.sum(-1, keepdims=True), 1.0)
    a_norm = adj / deg                                   # 'right' normalization (mean aggregation)

    x_src = jax.random.normal(keys[1], (R, n_src, d_in), jnp.float32)
    w_rel = jax.random.normal(keys[2], (R, d_in, d_out), jnp.float32) * 0.1   # per-relation conv weight
    w1 = jax.random.normal(keys[3], (d_out, hidden), jnp.float32) * 0.1       # Linear(d_out, 128).weight.T
    b1 = jax.random.normal(keys[4], (1, hidden), jnp.float32) * 0.1           # Linear(d_out, 128).bias
    w2 = jax.random.normal(keys[5], (1, hidden), jnp.float32) * 0.1           # Linear(128, 1, bias=False).weight
    gamma = 1.0 + jax.random.normal(keys[6], (1, d_out), jnp.float32) * 0.1   # BatchNorm1d weight
    bn_beta = jax.random.normal(keys[7], (1, d_out), jnp.float32) * 0.1       # BatchNorm1d bias

    out = jax.block_until_ready(
        hetero_general_layer(a_norm, x_src, w_rel, w1, b1, w2, gamma, bn_beta))
    ref = reference(a_norm, x_src, w_rel, w1, b1, w2, gamma, bn_beta)
    assert out.shape == (n_dst, d_out)
    max_err = float(jnp.max(jnp.abs(out - ref)))
    assert jnp.allclose(out, ref, atol=2e-3, rtol=2e-3), max_err
    print("KERNEL_OK")
</pallas_src>

<mosaic_0001>
module attributes {stable_mosaic.version = 11 : i64} {
  func.func @hetero_general_layer_kernel(%arg0: i32, %arg1: memref<1x128x128xbf16, #tpu.memory_space<vmem>>, %arg2: memref<1x128x128xbf16, #tpu.memory_space<vmem>>, %arg3: memref<1x128x128xbf16, #tpu.memory_space<vmem>>, %arg4: memref<128x128xbf16, #tpu.memory_space<vmem>>, %arg5: memref<1x128xf32, #tpu.memory_space<vmem>>, %arg6: memref<1x128xf32, #tpu.memory_space<vmem>>, %arg7: memref<1x128xf32, #tpu.memory_space<vmem>>, %arg8: memref<1x128xf32, #tpu.memory_space<vmem>>, %arg9: memref<128x128xf32, #tpu.memory_space<vmem>>, %arg10: memref<3x128x128xf32, #tpu.memory_space<vmem>>, %arg11: memref<3x128x1xf32, #tpu.memory_space<vmem>>) attributes {dimension_semantics = [#tpu.dimension_semantics<arbitrary>], iteration_bounds = array<i64: 3>, scalar_prefetch = 0 : i64, scratch_operands = 2 : i64, tpu.core_type = #tpu.core_type<tc>, window_params = [{transform_indices = @transform_0, window_bounds = array<i64: 1, 128, 128>}, {transform_indices = @transform_1, window_bounds = array<i64: 1, 128, 128>}, {transform_indices = @transform_2, window_bounds = array<i64: 1, 128, 128>}, {pipeline_mode = #tpu.pipeline_mode<synchronous>, transform_indices = @transform_3, window_bounds = array<i64: 128, 128>}, {pipeline_mode = #tpu.pipeline_mode<synchronous>, transform_indices = @transform_4, window_bounds = array<i64: 1, 128>}, {pipeline_mode = #tpu.pipeline_mode<synchronous>, transform_indices = @transform_5, window_bounds = array<i64: 1, 128>}, {pipeline_mode = #tpu.pipeline_mode<synchronous>, transform_indices = @transform_6, window_bounds = array<i64: 1, 128>}, {pipeline_mode = #tpu.pipeline_mode<synchronous>, transform_indices = @transform_7, window_bounds = array<i64: 1, 128>}, {pipeline_mode = #tpu.pipeline_mode<synchronous>, transform_indices = @transform_8, window_bounds = array<i64: 128, 128>}]} {
    %c0 = arith.constant 0 : index
    %c0_0 = arith.constant 0 : index
    %c0_1 = arith.constant 0 : index
    %0 = vector.load %arg2[%c0, %c0_0, %c0_1] : memref<1x128x128xbf16, #tpu.memory_space<vmem>>, vector<1x128x128xbf16>
    %1 = vector.shape_cast %0 : vector<1x128x128xbf16> to vector<128x128xbf16>
    %c0_2 = arith.constant 0 : index
    %c0_3 = arith.constant 0 : index
    %c0_4 = arith.constant 0 : index
    %2 = vector.load %arg3[%c0_2, %c0_3, %c0_4] : memref<1x128x128xbf16, #tpu.memory_space<vmem>>, vector<1x128x128xbf16>
    %3 = vector.shape_cast %2 : vector<1x128x128xbf16> to vector<128x128xbf16>
    %cst = arith.constant dense<0.000000e+00> : vector<128x128xf32>
    %4 = tpu.matmul %1, %3, %cst {dimension_numbers = #tpu.dot_dimension_numbers<[1], [0], [0], [1], [0, 0, 1, 1], [], []>} : vector<128x128xbf16>, vector<128x128xbf16>, vector<128x128xf32> -> vector<128x128xf32>
    %c0_5 = arith.constant 0 : index
    %c0_6 = arith.constant 0 : index
    %c0_7 = arith.constant 0 : index
    %5 = vector.load %arg1[%c0_5, %c0_6, %c0_7] : memref<1x128x128xbf16, #tpu.memory_space<vmem>>, vector<1x128x128xbf16>
    %6 = vector.shape_cast %5 : vector<1x128x128xbf16> to vector<128x128xbf16>
    %7 = arith.truncf %4 : vector<128x128xf32> to vector<128x128xbf16>
    %cst_8 = arith.constant dense<0.000000e+00> : vector<128x128xf32>
    %8 = tpu.matmul %6, %7, %cst_8 {dimension_numbers = #tpu.dot_dimension_numbers<[1], [0], [0], [1], [0, 0, 1, 1], [], []>} : vector<128x128xbf16>, vector<128x128xbf16>, vector<128x128xf32> -> vector<128x128xf32>
    %9 = arith.index_cast %arg0 : i32 to index
    %c0_9 = arith.constant 0 : index
    %c0_10 = arith.constant 0 : index
    %10 = vector.load %arg10[%9, %c0_9, %c0_10] : memref<3x128x128xf32, #tpu.memory_space<vmem>>, vector<1x128x128xf32>
    %11 = vector.shape_cast %10 : vector<1x128x128xf32> to vector<128x128xf32>
    %12 = vector.shape_cast %8 : vector<128x128xf32> to vector<1x128x128xf32>
    tpu.vector_store %arg10[%9, %c0_9, %c0_10], %12 {strides = array<i32>} : memref<3x128x128xf32, #tpu.memory_space<vmem>>, vector<1x128x128xf32>,
    %13 = arith.truncf %8 : vector<128x128xf32> to vector<128x128xbf16>
    %c0_11 = arith.constant 0 : index
    %c0_12 = arith.constant 0 : index
    %14 = vector.load %arg4[%c0_11, %c0_12] : memref<128x128xbf16, #tpu.memory_space<vmem>>, vector<128x128xbf16>
    %cst_13 = arith.constant dense<0.000000e+00> : vector<128x128xf32>
    %15 = tpu.matmul %13, %14, %cst_13 {dimension_numbers = #tpu.dot_dimension_numbers<[1], [0], [0], [1], [0, 0, 1, 1], [], []>} : vector<128x128xbf16>, vector<128x128xbf16>, vector<128x128xf32> -> vector<128x128xf32>
    %c0_14 = arith.constant 0 : index
    %c0_15 = arith.constant 0 : index
    %16 = vector.load %arg5[%c0_14, %c0_15] : memref<1x128xf32, #tpu.memory_space<vmem>>, vector<1x128xf32>
    %17 = vector.broadcast %16 : vector<1x128xf32> to vector<128x128xf32>
    %18 = arith.addf %15, %17 : vector<128x128xf32>
    %19 = math.tanh %18 : vector<128x128xf32>
    %c0_16 = arith.constant 0 : index
    %c0_17 = arith.constant 0 : index
    %20 = vector.load %arg6[%c0_16, %c0_17] : memref<1x128xf32, #tpu.memory_space<vmem>>, vector<1x128xf32>
    %21 = vector.broadcast %20 : vector<1x128xf32> to vector<128x128xf32>
    %22 = arith.mulf %19, %21 : vector<128x128xf32>
    %cst_18 = arith.constant dense<0.000000e+00> : vector<128xf32>
    %23 = vector.multi_reduction <add>, %22, %cst_18 [1] : vector<128x128xf32> to vector<128xf32>
    %24 = vector.shape_cast %23 : vector<128xf32> to vector<128x1xf32>
    %25 = arith.index_cast %arg0 : i32 to index
    %c0_19 = arith.constant 0 : index
    %c0_20 = arith.constant 0 : index
    %26 = vector.load %arg11[%25, %c0_19, %c0_20] : memref<3x128x1xf32, #tpu.memory_space<vmem>>, vector<1x128x1xf32>
    %27 = vector.shape_cast %26 : vector<1x128x1xf32> to vector<128x1xf32>
    %28 = vector.shape_cast %24 : vector<128x1xf32> to vector<1x128x1xf32>
    tpu.vector_store %arg11[%25, %c0_19, %c0_20], %28 {strides = array<i32>} : memref<3x128x1xf32, #tpu.memory_space<vmem>>, vector<1x128x1xf32>,
    %c2_i32 = arith.constant 2 : i32
    %29 = arith.cmpi eq, %arg0, %c2_i32 : i32
    %30 = arith.extui %29 : i1 to i32
    %c0_i32 = arith.constant 0 : i32
    %31 = arith.cmpi ne, %30, %c0_i32 : i32
    scf.if %31 {
      %c0_21 = arith.constant 0 : index
      %c0_22 = arith.constant 0 : index
      %c0_23 = arith.constant 0 : index
      %32 = vector.load %arg11[%c0_21, %c0_22, %c0_23] : memref<3x128x1xf32, #tpu.memory_space<vmem>>, vector<1x128x1xf32>
      %33 = vector.shape_cast %32 : vector<1x128x1xf32> to vector<128x1xf32>
      %cst_24 = arith.constant dense<0.000000e+00> : vector<1xf32>
      %34 = vector.multi_reduction <add>, %33, %cst_24 [0] : vector<128x1xf32> to vector<1xf32>
      %35 = vector.shape_cast %34 : vector<1xf32> to vector<1x1xf32>
      %cst_25 = arith.constant 1.280000e+02 : f32
      %36 = vector.broadcast %cst_25 : f32 to vector<1x1xf32>
      %37 = arith.divf %35, %36 : vector<1x1xf32>
      %c1 = arith.constant 1 : index
      %c0_26 = arith.constant 0 : index
      %c0_27 = arith.constant 0 : index
      %38 = vector.load %arg11[%c1, %c0_26, %c0_27] : memref<3x128x1xf32, #tpu.memory_space<vmem>>, vector<1x128x1xf32>
      %39 = vector.shape_cast %38 : vector<1x128x1xf32> to vector<128x1xf32>
      %cst_28 = arith.constant dense<0.000000e+00> : vector<1xf32>
      %40 = vector.multi_reduction <add>, %39, %cst_28 [0] : vector<128x1xf32> to vector<1xf32>
      %41 = vector.shape_cast %40 : vector<1xf32> to vector<1x1xf32>
      %cst_29 = arith.constant 1.280000e+02 : f32
      %42 = vector.broadcast %cst_29 : f32 to vector<1x1xf32>
      %43 = arith.divf %41, %42 : vector<1x1xf32>
      %c2 = arith.constant 2 : index
      %c0_30 = arith.constant 0 : index
      %c0_31 = arith.constant 0 : index
      %44 = vector.load %arg11[%c2, %c0_30, %c0_31] : memref<3x128x1xf32, #tpu.memory_space<vmem>>, vector<1x128x1xf32>
      %45 = vector.shape_cast %44 : vector<1x128x1xf32> to vector<128x1xf32>
      %cst_32 = arith.constant dense<0.000000e+00> : vector<1xf32>
      %46 = vector.multi_reduction <add>, %45, %cst_32 [0] : vector<128x1xf32> to vector<1xf32>
      %47 = vector.shape_cast %46 : vector<1xf32> to vector<1x1xf32>
      %cst_33 = arith.constant 1.280000e+02 : f32
      %48 = vector.broadcast %cst_33 : f32 to vector<1x1xf32>
      %49 = arith.divf %47, %48 : vector<1x1xf32>
      %50 = arith.maximumf %37, %43 : vector<1x1xf32>
      %51 = arith.maximumf %50, %49 : vector<1x1xf32>
      %52 = arith.subf %37, %51 : vector<1x1xf32>
      %53 = math.exp %52 : vector<1x1xf32>
      %54 = arith.subf %43, %51 : vector<1x1xf32>
      %55 = math.exp %54 : vector<1x1xf32>
      %56 = arith.subf %49, %51 : vector<1x1xf32>
      %57 = math.exp %56 : vector<1x1xf32>
      %58 = arith.addf %53, %55 : vector<1x1xf32>
      %59 = arith.addf %58, %57 : vector<1x1xf32>
      %60 = tpu.reciprocal %59 {approx = true} : vector<1x1xf32> -> vector<1x1xf32>
      %61 = arith.mulf %53, %60 : vector<1x1xf32>
      %c0_34 = arith.constant 0 : index
      %c0_35 = arith.constant 0 : index
      %c0_36 = arith.constant 0 : index
      %62 = vector.load %arg10[%c0_34, %c0_35, %c0_36] : memref<3x128x128xf32, #tpu.memory_space<vmem>>, vector<1x128x128xf32>
      %63 = vector.shape_cast %62 : vector<1x128x128xf32> to vector<128x128xf32>
      %64 = vector.broadcast %61 : vector<1x1xf32> to vector<128x128xf32>
      %65 = arith.mulf %64, %63 : vector<128x128xf32>
      %66 = arith.mulf %55, %60 : vector<1x1xf32>
      %c1_37 = arith.constant 1 : index
      %c0_38 = arith.constant 0 : index
      %c0_39 = arith.constant 0 : index
      %67 = vector.load %arg10[%c1_37, %c0_38, %c0_39] : memref<3x128x128xf32, #tpu.memory_space<vmem>>, vector<1x128x128xf32>
      %68 = vector.shape_cast %67 : vector<1x128x128xf32> to vector<128x128xf32>
      %69 = vector.broadcast %66 : vector<1x1xf32> to vector<128x128xf32>
      %70 = arith.mulf %69, %68 : vector<128x128xf32>
      %71 = arith.addf %65, %70 : vector<128x128xf32>
      %72 = arith.mulf %57, %60 : vector<1x1xf32>
      %c2_40 = arith.constant 2 : index
      %c0_41 = arith.constant 0 : index
      %c0_42 = arith.constant 0 : index
      %73 = vector.load %arg10[%c2_40, %c0_41, %c0_42] : memref<3x128x128xf32, #tpu.memory_space<vmem>>, vector<1x128x128xf32>
      %74 = vector.shape_cast %73 : vector<1x128x128xf32> to vector<128x128xf32>
      %75 = vector.broadcast %72 : vector<1x1xf32> to vector<128x128xf32>
      %76 = arith.mulf %75, %74 : vector<128x128xf32>
      %77 = arith.addf %71, %76 : vector<128x128xf32>
      %cst_43 = arith.constant dense<0.000000e+00> : vector<128xf32>
      %78 = vector.multi_reduction <add>, %77, %cst_43 [0] : vector<128x128xf32> to vector<128xf32>
      %79 = vector.shape_cast %78 : vector<128xf32> to vector<1x128xf32>
      %cst_44 = arith.constant 1.280000e+02 : f32
      %80 = vector.broadcast %cst_44 : f32 to vector<1x128xf32>
      %81 = arith.divf %79, %80 : vector<1x128xf32>
      %82 = vector.broadcast %81 : vector<1x128xf32> to vector<128x128xf32>
      %83 = arith.subf %77, %82 : vector<128x128xf32>
      %84 = arith.mulf %83, %83 : vector<128x128xf32>
      %cst_45 = arith.constant dense<0.000000e+00> : vector<128xf32>
      %85 = vector.multi_reduction <add>, %84, %cst_45 [0] : vector<128x128xf32> to vector<128xf32>
      %86 = vector.shape_cast %85 : vector<128xf32> to vector<1x128xf32>
      %cst_46 = arith.constant 1.280000e+02 : f32
      %87 = vector.broadcast %cst_46 : f32 to vector<1x128xf32>
      %88 = arith.divf %86, %87 : vector<1x128xf32>
      %89 = vector.broadcast %81 : vector<1x128xf32> to vector<128x128xf32>
      %90 = arith.subf %77, %89 : vector<128x128xf32>
      %cst_47 = arith.constant 9.99999974E-6 : f32
      %91 = vector.broadcast %cst_47 : f32 to vector<1x128xf32>
      %92 = arith.addf %88, %91 : vector<1x128xf32>
      %93 = math.rsqrt %92 : vector<1x128xf32>
      %94 = vector.broadcast %93 : vector<1x128xf32> to vector<128x128xf32>
      %95 = arith.mulf %90, %94 : vector<128x128xf32>
      %c0_48 = arith.constant 0 : index
      %c0_49 = arith.constant 0 : index
      %96 = vector.load %arg7[%c0_48, %c0_49] : memref<1x128xf32, #tpu.memory_space<vmem>>, vector<1x128xf32>
      %97 = vector.broadcast %96 : vector<1x128xf32> to vector<128x128xf32>
      %98 = arith.mulf %95, %97 : vector<128x128xf32>
      %c0_50 = arith.constant 0 : index
      %c0_51 = arith.constant 0 : index
      %99 = vector.load %arg8[%c0_50, %c0_51] : memref<1x128xf32, #tpu.memory_space<vmem>>, vector<1x128xf32>
      %100 = vector.broadcast %99 : vector<1x128xf32> to vector<128x128xf32>
      %101 = arith.addf %98, %100 : vector<128x128xf32>
      %cst_52 = arith.constant 0.000000e+00 : f32
      %102 = vector.broadcast %cst_52 : f32 to vector<128x128xf32>
      %103 = arith.maximumf %101, %102 : vector<128x128xf32>
      %104 = arith.mulf %103, %103 : vector<128x128xf32>
      %cst_53 = arith.constant dense<0.000000e+00> : vector<128xf32>
      %105 = vector.multi_reduction <add>, %104, %cst_53 [1] : vector<128x128xf32> to vector<128xf32>
      %106 = vector.shape_cast %105 : vector<128xf32> to vector<128x1xf32>
      %cst_54 = arith.constant 1.000000e-24 : f32
      %107 = vector.broadcast %cst_54 : f32 to vector<128x1xf32>
      %108 = arith.maximumf %106, %107 : vector<128x1xf32>
      %109 = math.rsqrt %108 : vector<128x1xf32>
      %110 = vector.broadcast %109 : vector<128x1xf32> to vector<128x128xf32>
      %111 = arith.mulf %103, %110 : vector<128x128xf32>
      %c0_55 = arith.constant 0 : index
      %c0_56 = arith.constant 0 : index
      %112 = vector.load %arg9[%c0_55, %c0_56] : memref<128x128xf32, #tpu.memory_space<vmem>>, vector<128x128xf32>
      tpu.vector_store %arg9[%c0_55, %c0_56], %111 {strides = array<i32>} : memref<128x128xf32, #tpu.memory_space<vmem>>, vector<128x128xf32>,
    } else {
    }
    return
  }
  func.func @transform_0(%arg0: i32) -> (i32, i32, i32) {
    %c0_i32 = arith.constant 0 : i32
    %c0_i32_0 = arith.constant 0 : i32
    %c0_i32_1 = arith.constant 0 : i32
    return %arg0, %c0_i32, %c0_i32_0 : i32, i32, i32
  }
  func.func @transform_1(%arg0: i32) -> (i32, i32, i32) {
    %c0_i32 = arith.constant 0 : i32
    %c0_i32_0 = arith.constant 0 : i32
    %c0_i32_1 = arith.constant 0 : i32
    return %arg0, %c0_i32, %c0_i32_0 : i32, i32, i32
  }
  func.func @transform_2(%arg0: i32) -> (i32, i32, i32) {
    %c0_i32 = arith.constant 0 : i32
    %c0_i32_0 = arith.constant 0 : i32
    %c0_i32_1 = arith.constant 0 : i32
    return %arg0, %c0_i32, %c0_i32_0 : i32, i32, i32
  }
  func.func @transform_3(%arg0: i32) -> (i32, i32) {
    %c0_i32 = arith.constant 0 : i32
    %c0_i32_0 = arith.constant 0 : i32
    %c0_i32_1 = arith.constant 0 : i32
    return %c0_i32, %c0_i32_0 : i32, i32
  }
  func.func @transform_4(%arg0: i32) -> (i32, i32) {
    %c0_i32 = arith.constant 0 : i32
    %c0_i32_0 = arith.constant 0 : i32
    %c0_i32_1 = arith.constant 0 : i32
    return %c0_i32, %c0_i32_0 : i32, i32
  }
  func.func @transform_5(%arg0: i32) -> (i32, i32) {
    %c0_i32 = arith.constant 0 : i32
    %c0_i32_0 = arith.constant 0 : i32
    %c0_i32_1 = arith.constant 0 : i32
    return %c0_i32, %c0_i32_0 : i32, i32
  }
  func.func @transform_6(%arg0: i32) -> (i32, i32) {
    %c0_i32 = arith.constant 0 : i32
    %c0_i32_0 = arith.constant 0 : i32
    %c0_i32_1 = arith.constant 0 : i32
    return %c0_i32, %c0_i32_0 : i32, i32
  }
  func.func @transform_7(%arg0: i32) -> (i32, i32) {
    %c0_i32 = arith.constant 0 : i32
    %c0_i32_0 = arith.constant 0 : i32
    %c0_i32_1 = arith.constant 0 : i32
    return %c0_i32, %c0_i32_0 : i32, i32
  }
  func.func @transform_8(%arg0: i32) -> (i32, i32) {
    %c0_i32 = arith.constant 0 : i32
    %c0_i32_0 = arith.constant 0 : i32
    %c0_i32_1 = arith.constant 0 : i32
    return %c0_i32, %c0_i32_0 : i32, i32
  }
}

</mosaic_0001>

<llo_original>
// kernel: tpu_custom_call.1
$region0: #{tpu_custom_call.1}
  #allocation0 [shape = 'u32[]', space=smem, size = 0x4, offset = 0x4, fixed_abs, tag = 'smem constant byte address 0x4 - core index']
  #allocation1 [shape = 'u32[72,128]{1,0:T(1,128)}', space=vmem, size = 0x9000, scoped, tag = 'internal scratch']
  #allocation2 [shape = 'f32[3,128,128]{2,1,0:T(8,128)}', space=vmem, size = 0x30000, scoped, tag = 'scratch operand']
  #allocation3 [shape = 'f32[3,128,1]{2,1,0:T(8,128)}', space=vmem, size = 0x30000, scoped, tag = 'scratch operand']
  %s0 = inlined_call_operand.hbm [shape: bf16[3,128,128], index: 0, kind: input, shape index: {}]
  %s1 = inlined_call_operand.hbm [shape: bf16[3,128,128], index: 1, kind: input, shape index: {}]
  %s2 = inlined_call_operand.hbm [shape: bf16[3,128,128], index: 2, kind: input, shape index: {}]
  %s3 = inlined_call_operand.hbm [shape: bf16[128,128], index: 3, kind: input, shape index: {}]
  %s4 = inlined_call_operand.vmem [shape: f32[1,128], index: 4, kind: input, shape index: {}]
  %s5 = inlined_call_operand.vmem [shape: f32[1,128], index: 5, kind: input, shape index: {}]
  %s6 = inlined_call_operand.vmem [shape: f32[1,128], index: 6, kind: input, shape index: {}]
  %s7 = inlined_call_operand.vmem [shape: f32[1,128], index: 7, kind: input, shape index: {}]
  %s8 = inlined_call_operand.hbm [shape: f32[128,128], index: 8, kind: output, shape index: {}]
  %s9 = sld [smem:[#allocation0]]
  $region85: #{tpu_custom_call.1} parent=0
    _
  %s11 = ssub.s32 1, %s9
  %s12 = scalar_select 0, %s11, %s9
  $region1: #{tpu_custom_call.1} parent=0
    #allocation4 [shape = 'u8[65536]{0}', space=vmem, size = 0x10000, scoped, tag = 'input window, operand 0']
    #allocation5 [shape = 's32[2]{0}', space=sflag, size = 0x8, scoped, tag = 'scoped memory for tpu_custom_call.1']
    #allocation6 [shape = 's32[2]{0}', space=sflag, size = 0x8, scoped, tag = 'scoped memory for tpu_custom_call.1']
    #allocation7 [shape = 'u8[65536]{0}', space=vmem, size = 0x10000, scoped, tag = 'input window, operand 1']
    #allocation8 [shape = 's32[2]{0}', space=sflag, size = 0x8, scoped, tag = 'scoped memory for tpu_custom_call.1']
    #allocation9 [shape = 'u8[65536]{0}', space=vmem, size = 0x10000, scoped, tag = 'input window, operand 2']
    #allocation10 [shape = 'u8[32768]{0}', space=vmem, size = 0x8000, scoped, tag = 'input window, operand 3, single buffered']
    #allocation11 [shape = 's32[1]{0}', space=sflag, size = 0x4, scoped, tag = 'scoped memory for tpu_custom_call.1']
    #allocation12 [shape = 'u8[65536]{0}', space=vmem, size = 0x10000, scoped, tag = 'output window, operand 0, single buffered']
    %13 = vsyncpa [#allocation5], 0
    %s14 = scalar_lea.sflag [#allocation5], 1
    %15 = vsyncpa %s14, 0
    %16 = vsyncpa [#allocation8], 0
    %s17 = scalar_lea.sflag [#allocation8], 1
    %18 = vsyncpa %s17, 0
    %19 = vsyncpa [#allocation11], 0
    %20 = vsyncpa [#allocation6], 0
    loop: start=0, step=1, limit=5
    $region2: #{tpu_custom_call.1} parent=1 // loop_pre_header
      _
    $region3: #{tpu_custom_call.1} parent=1 // loop_header
      %s22 = sphi 0, %s26
      %p23 = scmp.ge.s32.totalorder %s22, 5
      %s32 = sphi 0, %s34
      %s35 = sphi 0, %s32
      %s36 = sphi 0, %s35
      %s52 = sphi 0, %s36
      %s58 = sphi 0, %s60
      %s61 = sphi 0, %s58
      %s62 = sphi 0, %s61
      %s78 = sphi 0, %s62
      %s84 = sphi 0, %s86
      %s87 = sphi 0, %s84
      %s88 = sphi 0, %s87
      %s104 = sphi 0, %s88
      %s108 = sphi 0, %s108
      %s110 = sphi 0, %s108
      %s111 = sphi 0, %s110
      %s125 = sphi 0, %s111
      %s129 = sphi 0, %s129
      %s131 = sphi 0, %s129
      %s132 = sphi 0, %s131
      %s146 = sphi 0, %s132
      %s150 = sphi 0, %s150
      %s152 = sphi 0, %s150
      %s153 = sphi 0, %s152
      %s167 = sphi 0, %s153
      %s171 = sphi 0, %s171
      %s173 = sphi 0, %s171
      %s174 = sphi 0, %s173
      %s188 = sphi 0, %s174
      %s192 = sphi 0, %s192
      %s194 = sphi 0, %s192
      %s195 = sphi 0, %s194
      %s209 = sphi 0, %s195
      %s213 = sphi 0, %s213
      %s215 = sphi 0, %s213
      %s216 = sphi 0, %s215
      %s230 = sphi 0, %s216
    $region4: #{tpu_custom_call.1} parent=1 // loop_header_branch
      %25 = sbr.rel (%p23) target = $region8
    $region5: #{tpu_custom_call.1} parent=1 // loop_body
      %s27 = ssub.s32 %s22, 1
      %s28 = ssub.s32 %s22, 2
      %s29 = sadd.s32 %s22, 1
      %s30 = ssub.s32 %s22, %s29
      %p31 = scmp.eq.s32.totalorder %s30, 0
      %s33 = sadd.s32 %s32, 1
      %s34 = scalar_select %p31, %s32, %s33
      %p37 = pneg %p31
      %p38 = scmp.eq.s32.totalorder %s22, 2
      %p39 = por %p37, %p38
      %p40 = scmp.ne.s32.totalorder %s32, %s35
      %p41 = scmp.eq.s32.totalorder %s22, 0
      %p42 = por %p40, %p41
      %p43 = scmp.ne.s32.totalorder %s32, %s35
      %p44 = scmp.eq.s32.totalorder %s27, 2
      %p45 = por %p43, %p44
      %p46 = scmp.ne.s32.totalorder %s35, %s36
      %p47 = scmp.eq.s32.totalorder %s27, 0
      %p48 = por %p46, %p47
      %p49 = scmp.ne.s32.totalorder %s35, %s36
      %p50 = scmp.eq.s32.totalorder %s28, 2
      %p51 = por %p49, %p50
      %p53 = scmp.ne.s32.totalorder %s36, %s52
      %p54 = scmp.eq.s32.totalorder %s28, 0
      %p55 = por %p53, %p54
      %s56 = ssub.s32 %s22, %s29
      %p57 = scmp.eq.s32.totalorder %s56, 0
      %s59 = sadd.s32 %s58, 1
      %s60 = scalar_select %p57, %s58, %s59
      %p63 = pneg %p57
      %p64 = scmp.eq.s32.totalorder %s22, 2
      %p65 = por %p63, %p64
      %p66 = scmp.ne.s32.totalorder %s58, %s61
      %p67 = scmp.eq.s32.totalorder %s22, 0
      %p68 = por %p66, %p67
      %p69 = scmp.ne.s32.totalorder %s58, %s61
      %p70 = scmp.eq.s32.totalorder %s27, 2
      %p71 = por %p69, %p70
      %p72 = scmp.ne.s32.totalorder %s61, %s62
      %p73 = scmp.eq.s32.totalorder %s27, 0
      %p74 = por %p72, %p73
      %p75 = scmp.ne.s32.totalorder %s61, %s62
      %p76 = scmp.eq.s32.totalorder %s28, 2
      %p77 = por %p75, %p76
      %p79 = scmp.ne.s32.totalorder %s62, %s78
      %p80 = scmp.eq.s32.totalorder %s28, 0
      %p81 = por %p79, %p80
      %s82 = ssub.s32 %s22, %s29
      %p83 = scmp.eq.s32.totalorder %s82, 0
      %s85 = sadd.s32 %s84, 1
      %s86 = scalar_select %p83, %s84, %s85
      %p89 = pneg %p83
      %p90 = scmp.eq.s32.totalorder %s22, 2
      %p91 = por %p89, %p90
      %p92 = scmp.ne.s32.totalorder %s84, %s87
      %p93 = scmp.eq.s32.totalorder %s22, 0
      %p94 = por %p92, %p93
      %p95 = scmp.ne.s32.totalorder %s84, %s87
      %p96 = scmp.eq.s32.totalorder %s27, 2
      %p97 = por %p95, %p96
      %p98 = scmp.ne.s32.totalorder %s87, %s88
      %p99 = scmp.eq.s32.totalorder %s27, 0
      %p100 = por %p98, %p99
      %p101 = scmp.ne.s32.totalorder %s87, %s88
      %p102 = scmp.eq.s32.totalorder %s28, 2
      %p103 = por %p101, %p102
      %p105 = scmp.ne.s32.totalorder %s88, %s104
      %p106 = scmp.eq.s32.totalorder %s28, 0
      %p107 = por %p105, %p106
      %s109 = sadd.s32 %s108, 1
      %p112 = scmp.eq.s32.totalorder %s22, 2
      %p113 = scmp.ne.s32.totalorder %s108, %s110
      %p114 = scmp.eq.s32.totalorder %s22, 0
      %p115 = por %p113, %p114
      %p116 = scmp.ne.s32.totalorder %s108, %s110
      %p117 = scmp.eq.s32.totalorder %s27, 2
      %p118 = por %p116, %p117
      %p119 = scmp.ne.s32.totalorder %s110, %s111
      %p120 = scmp.eq.s32.totalorder %s27, 0
      %p121 = por %p119, %p120
      %p122 = scmp.ne.s32.totalorder %s110, %s111
      %p123 = scmp.eq.s32.totalorder %s28, 2
      %p124 = por %p122, %p123
      %p126 = scmp.ne.s32.totalorder %s111, %s125
      %p127 = scmp.eq.s32.totalorder %s28, 0
      %p128 = por %p126, %p127
      %s130 = sadd.s32 %s129, 1
      %p133 = scmp.eq.s32.totalorder %s22, 2
      %p134 = scmp.ne.s32.totalorder %s129, %s131
      %p135 = scmp.eq.s32.totalorder %s22, 0
      %p136 = por %p134, %p135
      %p137 = scmp.ne.s32.totalorder %s129, %s131
      %p138 = scmp.eq.s32.totalorder %s27, 2
      %p139 = por %p137, %p138
      %p140 = scmp.ne.s32.totalorder %s131, %s132
      %p141 = scmp.eq.s32.totalorder %s27, 0
      %p142 = por %p140, %p141
      %p143 = scmp.ne.s32.totalorder %s131, %s132
      %p144 = scmp.eq.s32.totalorder %s28, 2
      %p145 = por %p143, %p144
      %p147 = scmp.ne.s32.totalorder %s132, %s146
      %p148 = scmp.eq.s32.totalorder %s28, 0
      %p149 = por %p147, %p148
      %s151 = sadd.s32 %s150, 1
      %p154 = scmp.eq.s32.totalorder %s22, 2
      %p155 = scmp.ne.s32.totalorder %s150, %s152
      %p156 = scmp.eq.s32.totalorder %s22, 0
      %p157 = por %p155, %p156
      %p158 = scmp.ne.s32.totalorder %s150, %s152
      %p159 = scmp.eq.s32.totalorder %s27, 2
      %p160 = por %p158, %p159
      %p161 = scmp.ne.s32.totalorder %s152, %s153
      %p162 = scmp.eq.s32.totalorder %s27, 0
      %p163 = por %p161, %p162
      %p164 = scmp.ne.s32.totalorder %s152, %s153
      %p165 = scmp.eq.s32.totalorder %s28, 2
      %p166 = por %p164, %p165
      %p168 = scmp.ne.s32.totalorder %s153, %s167
      %p169 = scmp.eq.s32.totalorder %s28, 0
      %p170 = por %p168, %p169
      %s172 = sadd.s32 %s171, 1
      %p175 = scmp.eq.s32.totalorder %s22, 2
      %p176 = scmp.ne.s32.totalorder %s171, %s173
      %p177 = scmp.eq.s32.totalorder %s22, 0
      %p178 = por %p176, %p177
      %p179 = scmp.ne.s32.totalorder %s171, %s173
      %p180 = scmp.eq.s32.totalorder %s27, 2
      %p181 = por %p179, %p180
      %p182 = scmp.ne.s32.totalorder %s173, %s174
      %p183 = scmp.eq.s32.totalorder %s27, 0
      %p184 = por %p182, %p183
      %p185 = scmp.ne.s32.totalorder %s173, %s174
      %p186 = scmp.eq.s32.totalorder %s28, 2
      %p187 = por %p185, %p186
      %p189 = scmp.ne.s32.totalorder %s174, %s188
      %p190 = scmp.eq.s32.totalorder %s28, 0
      %p191 = por %p189, %p190
      %s193 = sadd.s32 %s192, 1
      %p196 = scmp.eq.s32.totalorder %s22, 2
      %p197 = scmp.ne.s32.totalorder %s192, %s194
      %p198 = scmp.eq.s32.totalorder %s22, 0
      %p199 = por %p197, %p198
      %p200 = scmp.ne.s32.totalorder %s192, %s194
      %p201 = scmp.eq.s32.totalorder %s27, 2
      %p202 = por %p200, %p201
      %p203 = scmp.ne.s32.totalorder %s194, %s195
      %p204 = scmp.eq.s32.totalorder %s27, 0
      %p205 = por %p203, %p204
      %p206 = scmp.ne.s32.totalorder %s194, %s195
      %p207 = scmp.eq.s32.totalorder %s28, 2
      %p208 = por %p206, %p207
      %p210 = scmp.ne.s32.totalorder %s195, %s209
      %p211 = scmp.eq.s32.totalorder %s28, 0
      %p212 = por %p210, %p211
      %s214 = sadd.s32 %s213, 1
      %p217 = scmp.eq.s32.totalorder %s22, 2
      %p218 = scmp.ne.s32.totalorder %s213, %s215
      %p219 = scmp.eq.s32.totalorder %s22, 0
      %p220 = por %p218, %p219
      %p221 = scmp.ne.s32.totalorder %s213, %s215
      %p222 = scmp.eq.s32.totalorder %s27, 2
      %p223 = por %p221, %p222
      %p224 = scmp.ne.s32.totalorder %s215, %s216
      %p225 = scmp.eq.s32.totalorder %s27, 0
      %p226 = por %p224, %p225
      %p227 = scmp.ne.s32.totalorder %s215, %s216
      %p228 = scmp.eq.s32.totalorder %s28, 2
      %p229 = por %p227, %p228
      %p231 = scmp.ne.s32.totalorder %s216, %s230
      %p232 = scmp.eq.s32.totalorder %s28, 0
      %p233 = por %p231, %p232
      %p234 = scmp.le.s32.totalorder 1, %s22
      %p235 = scmp.lt.s32.totalorder %s22, 4
      %p236 = pnand %p234, %p235
      %p237 = pneg %p236
      // Predicated region
      $region9: #{tpu_custom_call.1} parent=5 // pred_check
        _
      $region10: #{tpu_custom_call.1} parent=5 // pred_check_branch
        %239 = sbr.rel (%p236) target = $region12
      $region11: #{tpu_custom_call.1} parent=5 // pred_region
        %s240 = ssub.s32 %s22, 1
        // Predicated region
        $region13: #{tpu_custom_call.1} parent=11 // pred_check
          %p241 = pneg %p121
        $region14: #{tpu_custom_call.1} parent=11 // pred_check_branch
          %243 = sbr.rel (%p241) target = $region16
        $region15: #{tpu_custom_call.1} parent=11 // pred_region
          %245 = vsyncadd [#allocation11], 0
          %s246 = sshll.u32 %s3, 4
          %s247 = int_to_ptr.hbm [resolvable:$true] %s246
          %s248 = sshll.u32 [#allocation10], 4
          %s249 = int_to_ptr.vmem [resolvable:$true] %s248
          %254 = dma.hbm_to_vmem [thread:$0]  %s247, 1024, %s249, [#allocation11], 64, 64, 4
        $region16: #{tpu_custom_call.1} parent=11 // pred_fallthru
          _
        // Predicated region
        $region17: #{tpu_custom_call.1} parent=11 // pred_check
          %p255 = pneg %p142
        $region18: #{tpu_custom_call.1} parent=11 // pred_check_branch
          %257 = sbr.rel (%p255) target = $region20
        $region19: #{tpu_custom_call.1} parent=11 // pred_region
          _
        $region20: #{tpu_custom_call.1} parent=11 // pred_fallthru
          _
        // Predicated region
        $region21: #{tpu_custom_call.1} parent=11 // pred_check
          %p258 = pneg %p163
        $region22: #{tpu_custom_call.1} parent=11 // pred_check_branch
          %260 = sbr.rel (%p258) target = $region24
        $region23: #{tpu_custom_call.1} parent=11 // pred_region
          _
        $region24: #{tpu_custom_call.1} parent=11 // pred_fallthru
          _
        // Predicated region
        $region25: #{tpu_custom_call.1} parent=11 // pred_check
          %p261 = pneg %p184
        $region26: #{tpu_custom_call.1} parent=11 // pred_check_branch
          %263 = sbr.rel (%p261) target = $region28
        $region27: #{tpu_custom_call.1} parent=11 // pred_region
          _
        $region28: #{tpu_custom_call.1} parent=11 // pred_fallthru
          _
        // Predicated region
        $region29: #{tpu_custom_call.1} parent=11 // pred_check
          %p264 = pneg %p205
        $region30: #{tpu_custom_call.1} parent=11 // pred_check_branch
          %266 = sbr.rel (%p264) target = $region32
        $region31: #{tpu_custom_call.1} parent=11 // pred_region
          _
        $region32: #{tpu_custom_call.1} parent=11 // pred_fallthru
          _
      $region12: #{tpu_custom_call.1} parent=5 // pred_fallthru
        _
      %p267 = scmp.lt.s32.totalorder %s22, 3
      // Predicated region
      $region33: #{tpu_custom_call.1} parent=5 // pred_check
        %p268 = pneg %p267
      $region34: #{tpu_custom_call.1} parent=5 // pred_check_branch
        %270 = sbr.rel (%p268) target = $region36
      $region35: #{tpu_custom_call.1} parent=5 // pred_region
        // Predicated region
        $region37: #{tpu_custom_call.1} parent=35 // pred_check
          %p271 = pneg %p42
        $region38: #{tpu_custom_call.1} parent=35 // pred_check_branch
          %273 = sbr.rel (%p271) target = $region40
        $region39: #{tpu_custom_call.1} parent=35 // pred_region
          %s274 = sand.u32 %s32, 1
          %s275 = scalar_lea.sflag [#allocation5], %s274
          %s276 = sand.u32 %s32, 1
          %s277 = smul.addr %s276, 64
          %s278 = scalar_lea.vmem [#allocation4], %s277
          %280 = vsyncadd %s275, 0
          %s281 = smul.addr %s22, 16
          %s282 = smul.addr %s281, 4
          %s283 = scalar_lea.hbm %s0, %s282
          %s284 = sshll.u32 %s283, 4
          %s285 = int_to_ptr.hbm [resolvable:$true] %s284
          %s286 = sshll.u32 %s278, 4
          %s287 = int_to_ptr.vmem [resolvable:$true] %s286
          %292 = dma.hbm_to_vmem [thread:$0]  %s285, 1024, %s287, %s275, 64, 64, 4
        $region40: #{tpu_custom_call.1} parent=35 // pred_fallthru
          _
        // Predicated region
        $region41: #{tpu_custom_call.1} parent=35 // pred_check
          %p293 = pneg %p68
        $region42: #{tpu_custom_call.1} parent=35 // pred_check_branch
          %295 = sbr.rel (%p293) target = $region44
        $region43: #{tpu_custom_call.1} parent=35 // pred_region
          %s296 = sand.u32 %s22, 1
          %s297 = scalar_lea.sflag [#allocation8], %s296
          %s298 = sand.u32 %s58, 1
          %s299 = smul.addr %s298, 64
          %s300 = scalar_lea.vmem [#allocation7], %s299
          %302 = vsyncadd %s297, 0
          %s303 = smul.addr %s22, 16
          %s304 = smul.addr %s303, 4
          %s305 = scalar_lea.hbm %s1, %s304
          %s306 = sshll.u32 %s305, 4
          %s307 = int_to_ptr.hbm [resolvable:$true] %s306
          %s308 = sshll.u32 %s300, 4
          %s309 = int_to_ptr.vmem [resolvable:$true] %s308
          %314 = dma.hbm_to_vmem [thread:$0]  %s307, 1024, %s309, %s297, 64, 64, 4
        $region44: #{tpu_custom_call.1} parent=35 // pred_fallthru
          _
        // Predicated region
        $region45: #{tpu_custom_call.1} parent=35 // pred_check
          %p315 = pneg %p94
        $region46: #{tpu_custom_call.1} parent=35 // pred_check_branch
          %317 = sbr.rel (%p315) target = $region48
        $region47: #{tpu_custom_call.1} parent=35 // pred_region
          %s318 = sand.u32 %s22, 1
          %s319 = scalar_lea.sflag [#allocation8], %s318
          %s320 = sand.u32 %s84, 1
          %s321 = smul.addr %s320, 64
          %s322 = scalar_lea.vmem [#allocation9], %s321
          %324 = vsyncadd %s319, 0
          %s325 = smul.addr %s22, 16
          %s326 = smul.addr %s325, 4
          %s327 = scalar_lea.hbm %s2, %s326
          %s328 = sshll.u32 %s327, 4
          %s329 = int_to_ptr.hbm [resolvable:$true] %s328
          %s330 = sshll.u32 %s322, 4
          %s331 = int_to_ptr.vmem [resolvable:$true] %s330
          %336 = dma.hbm_to_vmem [thread:$0]  %s329, 1024, %s331, %s319, 64, 64, 4
        $region48: #{tpu_custom_call.1} parent=35 // pred_fallthru
          _
      $region36: #{tpu_custom_call.1} parent=5 // pred_fallthru
        _
      %p337 = scmp.le.s32.totalorder 1, %s22
      %p338 = scmp.lt.s32.totalorder %s22, 4
      %p339 = pnand %p337, %p338
      %p340 = pneg %p339
      // Predicated region
      $region49: #{tpu_custom_call.1} parent=5 // pred_check
        _
      $region50: #{tpu_custom_call.1} parent=5 // pred_check_branch
        %342 = sbr.rel (%p339) target = $region52
      $region51: #{tpu_custom_call.1} parent=5 // pred_region
        %s343 = ssub.s32 %s22, 1
        %s344 = sand.u32 %s35, 1
        %s345 = scalar_lea.sflag [#allocation5], %s344
        %s346 = sand.u32 %s35, 1
        %s347 = smul.addr %s346, 64
        %s348 = scalar_lea.vmem [#allocation4], %s347
        // Predicated region
        $region53: #{tpu_custom_call.1} parent=51 // pred_check
          %p349 = pneg %p48
        $region54: #{tpu_custom_call.1} parent=51 // pred_check_branch
          %351 = sbr.rel (%p349) target = $region56
        $region55: #{tpu_custom_call.1} parent=51 // pred_region
          %353 = dma.done %s345, 1024
        $region56: #{tpu_custom_call.1} parent=51 // pred_fallthru
          _
        %s354 = sand.u32 %s27, 1
        %s355 = scalar_lea.sflag [#allocation8], %s354
        %s356 = sand.u32 %s61, 1
        %s357 = smul.addr %s356, 64
        %s358 = scalar_lea.vmem [#allocation7], %s357
        // Predicated region
        $region57: #{tpu_custom_call.1} parent=51 // pred_check
          %p359 = pneg %p74
        $region58: #{tpu_custom_call.1} parent=51 // pred_check_branch
          %361 = sbr.rel (%p359) target = $region60
        $region59: #{tpu_custom_call.1} parent=51 // pred_region
          %363 = dma.done %s355, 1024
        $region60: #{tpu_custom_call.1} parent=51 // pred_fallthru
          _
        %s364 = sand.u32 %s27, 1
        %s365 = scalar_lea.sflag [#allocation8], %s364
        %s366 = sand.u32 %s87, 1
        %s367 = smul.addr %s366, 64
        %s368 = scalar_lea.vmem [#allocation9], %s367
        // Predicated region
        $region61: #{tpu_custom_call.1} parent=51 // pred_check
          %p369 = pneg %p100
        $region62: #{tpu_custom_call.1} parent=51 // pred_check_branch
          %371 = sbr.rel (%p369) target = $region64
        $region63: #{tpu_custom_call.1} parent=51 // pred_region
          %373 = dma.done %s365, 1024
        $region64: #{tpu_custom_call.1} parent=51 // pred_fallthru
          _
        // Predicated region
        $region65: #{tpu_custom_call.1} parent=51 // pred_check
          %p374 = pneg %p121
        $region66: #{tpu_custom_call.1} parent=51 // pred_check_branch
          %376 = sbr.rel (%p374) target = $region68
        $region67: #{tpu_custom_call.1} parent=51 // pred_region
          %378 = dma.done [#allocation11], 1024
        $region68: #{tpu_custom_call.1} parent=51 // pred_fallthru
          _
        %s379 = sand.u32 %s35, 1
        %s380 = scalar_lea.sflag [#allocation5], %s379
        %s381 = sand.u32 %s35, 1
        %s382 = smul.addr %s381, 64
        %s383 = scalar_lea.vmem [#allocation4], %s382
        %p384 = pneg %p48
        %p385 = pneg %p45
        %s386 = sand.u32 %s27, 1
        %s387 = scalar_lea.sflag [#allocation8], %s386
        %s388 = sand.u32 %s61, 1
        %s389 = smul.addr %s388, 64
        %s390 = scalar_lea.vmem [#allocation7], %s389
        %p391 = pneg %p74
        %p392 = pneg %p71
        %s393 = sand.u32 %s27, 1
        %s394 = scalar_lea.sflag [#allocation8], %s393
        %s395 = sand.u32 %s87, 1
        %s396 = smul.addr %s395, 64
        %s397 = scalar_lea.vmem [#allocation9], %s396
        %p398 = pneg %p100
        %p399 = pneg %p97
        %p400 = pneg %p121
        %p401 = pneg %p118
        %p402 = pneg %p142
        %p403 = pneg %p139
        %p404 = pneg %p163
        %p405 = pneg %p160
        %p406 = pneg %p184
        %p407 = pneg %p181
        %p408 = pneg %p205
        %p409 = pneg %p202
        %p410 = pneg %p226
        %p411 = pneg %p223
        %v412 = vld [vmem:[%s358] sm:$0xf]
        %v413 = vld [vmem:[%s358 + $0x4] sm:$0xf]
        %v414 = vld [vmem:[%s358 + $0x8] sm:$0xf]
        %v415 = vld [vmem:[%s358 + $0xc] sm:$0xf]
        %v416 = vld [vmem:[%s358 + $0x10] sm:$0xf]
        %v417 = vld [vmem:[%s358 + $0x14] sm:$0xf]
        %v418 = vld [vmem:[%s358 + $0x18] sm:$0xf]
        %v419 = vld [vmem:[%s358 + $0x1c] sm:$0xf]
        %v420 = vld [vmem:[%s358 + $0x20] sm:$0xf]
        %v421 = vld [vmem:[%s358 + $0x24] sm:$0xf]
        %v422 = vld [vmem:[%s358 + $0x28] sm:$0xf]
        %v423 = vld [vmem:[%s358 + $0x2c] sm:$0xf]
        %v424 = vld [vmem:[%s358 + $0x30] sm:$0xf]
        %v425 = vld [vmem:[%s358 + $0x34] sm:$0xf]
        %v426 = vld [vmem:[%s358 + $0x38] sm:$0xf]
        %v427 = vld [vmem:[%s358 + $0x3c] sm:$0xf]
        %v428 = vld [vmem:[%s368] sm:$0xf]
        %v429 = vld [vmem:[%s368 + $0x4] sm:$0xf]
        %v430 = vld [vmem:[%s368 + $0x8] sm:$0xf]
        %v431 = vld [vmem:[%s368 + $0xc] sm:$0xf]
        %v432 = vld [vmem:[%s368 + $0x10] sm:$0xf]
        %v433 = vld [vmem:[%s368 + $0x14] sm:$0xf]
        %v434 = vld [vmem:[%s368 + $0x18] sm:$0xf]
        %v435 = vld [vmem:[%s368 + $0x1c] sm:$0xf]
        %v436 = vld [vmem:[%s368 + $0x20] sm:$0xf]
        %v437 = vld [vmem:[%s368 + $0x24] sm:$0xf]
        %v438 = vld [vmem:[%s368 + $0x28] sm:$0xf]
        %v439 = vld [vmem:[%s368 + $0x2c] sm:$0xf]
        %v440 = vld [vmem:[%s368 + $0x30] sm:$0xf]
        %v441 = vld [vmem:[%s368 + $0x34] sm:$0xf]
        %v442 = vld [vmem:[%s368 + $0x38] sm:$0xf]
        %v443 = vld [vmem:[%s368 + $0x3c] sm:$0xf]
        %v460 = vunpack.c.l.b16 %v412
        %v461 = vunpack.c.l.b16 %v413
        %v462 = vunpack.c.l.b16 %v414
        %v463 = vunpack.c.l.b16 %v415
        %v464 = vunpack.c.l.b16 %v416
        %v465 = vunpack.c.l.b16 %v417
        %v466 = vunpack.c.l.b16 %v418
        %v467 = vunpack.c.l.b16 %v419
        %v468 = vunpack.c.l.b16 %v420
        %v469 = vunpack.c.l.b16 %v421
        %v470 = vunpack.c.l.b16 %v422
        %v471 = vunpack.c.l.b16 %v423
        %v472 = vunpack.c.l.b16 %v424
        %v473 = vunpack.c.l.b16 %v425
        %v474 = vunpack.c.l.b16 %v426
        %v475 = vunpack.c.l.b16 %v427
        %v476 = vpack.c.b16 %v461, %v460
        %v477 = vpack.c.b16 %v463, %v462
        %v478 = vpack.c.b16 %v465, %v464
        %v479 = vpack.c.b16 %v467, %v466
        %v480 = vpack.c.b16 %v469, %v468
        %v481 = vpack.c.b16 %v471, %v470
        %v482 = vpack.c.b16 %v473, %v472
        %v483 = vpack.c.b16 %v475, %v474
        %v508 = vunpack.c.l.b16 %v428
        %v509 = vunpack.c.l.b16 %v429
        %v510 = vunpack.c.l.b16 %v430
        %v511 = vunpack.c.l.b16 %v431
        %v512 = vunpack.c.l.b16 %v432
        %v513 = vunpack.c.l.b16 %v433
        %v514 = vunpack.c.l.b16 %v434
        %v515 = vunpack.c.l.b16 %v435
        %v516 = vunpack.c.l.b16 %v436
        %v517 = vunpack.c.l.b16 %v437
        %v518 = vunpack.c.l.b16 %v438
        %v519 = vunpack.c.l.b16 %v439
        %v520 = vunpack.c.l.b16 %v440
        %v521 = vunpack.c.l.b16 %v441
        %v522 = vunpack.c.l.b16 %v442
        %v523 = vunpack.c.l.b16 %v443
        %v524 = vpack.c.b16 %v509, %v508
        %v525 = vpack.c.b16 %v511, %v510
        %v526 = vpack.c.b16 %v513, %v512
        %v527 = vpack.c.b16 %v515, %v514
        %v528 = vpack.c.b16 %v517, %v516
        %v529 = vpack.c.b16 %v519, %v518
        %v530 = vpack.c.b16 %v521, %v520
        %v531 = vpack.c.b16 %v523, %v522
        %540 = vmatpush.bf16.msra.mxu0 %v531
        %541 = vmatpush.bf16.msra.mxu0 %v530
        %542 = vmatpush.bf16.msra.mxu0 %v529
        %543 = vmatpush.bf16.msra.mxu0 %v528
        %544 = vmatpush.bf16.msra.mxu0 %v527
        %545 = vmatpush.bf16.msra.mxu0 %v526
        %546 = vmatpush.bf16.msra.mxu0 %v525
        %547 = vmatpush.bf16.msra.mxu0 %v524
        %548 = vmatmul.bf16.gmra.mxu0 %v476
        %v549 = vpop.f32.mrf.mxu0
        %v550 = vadd.f32 0.0, %v549
        %v551 = vpop.f32.mrf.mxu0
        %v552 = vadd.f32 0.0, %v551
        %553 = vmatmul.bf16.gmra.mxu0 %v477
        %v554 = vpop.f32.mrf.mxu0
        %v555 = vadd.f32 0.0, %v554
        %v556 = vpop.f32.mrf.mxu0
        %v557 = vadd.f32 0.0, %v556
        %558 = vmatmul.bf16.gmra.mxu0 %v478
        %v559 = vpop.f32.mrf.mxu0
        %v560 = vadd.f32 0.0, %v559
        %v561 = vpop.f32.mrf.mxu0
        %v562 = vadd.f32 0.0, %v561
        %563 = vmatmul.bf16.gmra.mxu0 %v479
        %v564 = vpop.f32.mrf.mxu0
        %v565 = vadd.f32 0.0, %v564
        %v566 = vpop.f32.mrf.mxu0
        %v567 = vadd.f32 0.0, %v566
        %568 = vmatmul.bf16.gmra.mxu0 %v480
        %v569 = vpop.f32.mrf.mxu0
        %v570 = vadd.f32 0.0, %v569
        %v571 = vpop.f32.mrf.mxu0
        %v572 = vadd.f32 0.0, %v571
        %573 = vmatmul.bf16.gmra.mxu0 %v481
        %v574 = vpop.f32.mrf.mxu0
        %v575 = vadd.f32 0.0, %v574
        %v576 = vpop.f32.mrf.mxu0
        %v577 = vadd.f32 0.0, %v576
        %578 = vmatmul.bf16.gmra.mxu0 %v482
        %v579 = vpop.f32.mrf.mxu0
        %v580 = vadd.f32 0.0, %v579
        %v581 = vpop.f32.mrf.mxu0
        %v582 = vadd.f32 0.0, %v581
        %583 = vmatmul.bf16.gmra.mxu0 %v483
        %v584 = vpop.f32.mrf.mxu0
        %v585 = vadd.f32 0.0, %v584
        %v586 = vpop.f32.mrf.mxu0
        %v587 = vadd.f32 0.0, %v586
        %588 = vdwg.mxu0
        %v589 = vld [vmem:[%s348] sm:$0xf]
        %v590 = vld [vmem:[%s348 + $0x4] sm:$0xf]
        %v591 = vld [vmem:[%s348 + $0x8] sm:$0xf]
        %v592 = vld [vmem:[%s348 + $0xc] sm:$0xf]
        %v593 = vld [vmem:[%s348 + $0x10] sm:$0xf]
        %v594 = vld [vmem:[%s348 + $0x14] sm:$0xf]
        %v595 = vld [vmem:[%s348 + $0x18] sm:$0xf]
        %v596 = vld [vmem:[%s348 + $0x1c] sm:$0xf]
        %v597 = vld [vmem:[%s348 + $0x20] sm:$0xf]
        %v598 = vld [vmem:[%s348 + $0x24] sm:$0xf]
        %v599 = vld [vmem:[%s348 + $0x28] sm:$0xf]
        %v600 = vld [vmem:[%s348 + $0x2c] sm:$0xf]
        %v601 = vld [vmem:[%s348 + $0x30] sm:$0xf]
        %v602 = vld [vmem:[%s348 + $0x34] sm:$0xf]
        %v603 = vld [vmem:[%s348 + $0x38] sm:$0xf]
        %v604 = vld [vmem:[%s348 + $0x3c] sm:$0xf]
        %v605 = vpack.c.bf16 %v552, %v550
        %v606 = vpack.c.bf16 %v557, %v555
        %v607 = vpack.c.bf16 %v562, %v560
        %v608 = vpack.c.bf16 %v567, %v565
        %v609 = vpack.c.bf16 %v572, %v570
        %v610 = vpack.c.bf16 %v577, %v575
        %v611 = vpack.c.bf16 %v582, %v580
        %v612 = vpack.c.bf16 %v587, %v585
        %v629 = vunpack.c.l.b16 %v589
        %v630 = vunpack.c.l.b16 %v590
        %v631 = vunpack.c.l.b16 %v591
        %v632 = vunpack.c.l.b16 %v592
        %v633 = vunpack.c.l.b16 %v593
        %v634 = vunpack.c.l.b16 %v594
        %v635 = vunpack.c.l.b16 %v595
        %v636 = vunpack.c.l.b16 %v596
        %v637 = vunpack.c.l.b16 %v597
        %v638 = vunpack.c.l.b16 %v598
        %v639 = vunpack.c.l.b16 %v599
        %v640 = vunpack.c.l.b16 %v600
        %v641 = vunpack.c.l.b16 %v601
        %v642 = vunpack.c.l.b16 %v602
        %v643 = vunpack.c.l.b16 %v603
        %v644 = vunpack.c.l.b16 %v604
        %v645 = vpack.c.b16 %v630, %v629
        %v646 = vpack.c.b16 %v632, %v631
        %v647 = vpack.c.b16 %v634, %v633
        %v648 = vpack.c.b16 %v636, %v635
        %v649 = vpack.c.b16 %v638, %v637
        %v650 = vpack.c.b16 %v640, %v639
        %v651 = vpack.c.b16 %v642, %v641
        %v652 = vpack.c.b16 %v644, %v643
        %661 = vmatpush.bf16.msra.mxu0 %v612
        %662 = vmatpush.bf16.msra.mxu0 %v611
        %663 = vmatpush.bf16.msra.mxu0 %v610
        %664 = vmatpush.bf16.msra.mxu0 %v609
        %665 = vmatpush.bf16.msra.mxu0 %v608
        %666 = vmatpush.bf16.msra.mxu0 %v607
        %667 = vmatpush.bf16.msra.mxu0 %v606
        %668 = vmatpush.bf16.msra.mxu0 %v605
        %669 = vmatmul.bf16.gmra.mxu0 %v645
        %v670 = vpop.f32.mrf.mxu0
        %v671 = vadd.f32 0.0, %v670
        %v672 = vpop.f32.mrf.mxu0
        %v673 = vadd.f32 0.0, %v672
        %674 = vmatmul.bf16.gmra.mxu0 %v646
        %v675 = vpop.f32.mrf.mxu0
        %v676 = vadd.f32 0.0, %v675
        %v677 = vpop.f32.mrf.mxu0
        %v678 = vadd.f32 0.0, %v677
        %679 = vmatmul.bf16.gmra.mxu0 %v647
        %v680 = vpop.f32.mrf.mxu0
        %v681 = vadd.f32 0.0, %v680
        %v682 = vpop.f32.mrf.mxu0
        %v683 = vadd.f32 0.0, %v682
        %684 = vmatmul.bf16.gmra.mxu0 %v648
        %v685 = vpop.f32.mrf.mxu0
        %v686 = vadd.f32 0.0, %v685
        %v687 = vpop.f32.mrf.mxu0
        %v688 = vadd.f32 0.0, %v687
        %689 = vmatmul.bf16.gmra.mxu0 %v649
        %v690 = vpop.f32.mrf.mxu0
        %v691 = vadd.f32 0.0, %v690
        %v692 = vpop.f32.mrf.mxu0
        %v693 = vadd.f32 0.0, %v692
        %694 = vmatmul.bf16.gmra.mxu0 %v650
        %v695 = vpop.f32.mrf.mxu0
        %v696 = vadd.f32 0.0, %v695
        %v697 = vpop.f32.mrf.mxu0
        %v698 = vadd.f32 0.0, %v697
        %699 = vmatmul.bf16.gmra.mxu0 %v651
        %v700 = vpop.f32.mrf.mxu0
        %v701 = vadd.f32 0.0, %v700
        %v702 = vpop.f32.mrf.mxu0
        %v703 = vadd.f32 0.0, %v702
        %704 = vmatmul.bf16.gmra.mxu0 %v652
        %v705 = vpop.f32.mrf.mxu0
        %v706 = vadd.f32 0.0, %v705
        %v707 = vpop.f32.mrf.mxu0
        %v708 = vadd.f32 0.0, %v707
        %709 = vdwg.mxu0
        %s710 = smul.u32 %s27, 128
        %s711 = scalar_lea.vmem [#allocation2], %s710
        %712 = vst [vmem:[%s711] sm:$0xff] %v671
        %713 = vst [vmem:[%s711 + $0x8] sm:$0xff] %v673
        %714 = vst [vmem:[%s711 + $0x10] sm:$0xff] %v676
        %715 = vst [vmem:[%s711 + $0x18] sm:$0xff] %v678
        %716 = vst [vmem:[%s711 + $0x20] sm:$0xff] %v681
        %717 = vst [vmem:[%s711 + $0x28] sm:$0xff] %v683
        %718 = vst [vmem:[%s711 + $0x30] sm:$0xff] %v686
        %719 = vst [vmem:[%s711 + $0x38] sm:$0xff] %v688
        %720 = vst [vmem:[%s711 + $0x40] sm:$0xff] %v691
        %721 = vst [vmem:[%s711 + $0x48] sm:$0xff] %v693
        %722 = vst [vmem:[%s711 + $0x50] sm:$0xff] %v696
        %723 = vst [vmem:[%s711 + $0x58] sm:$0xff] %v698
        %724 = vst [vmem:[%s711 + $0x60] sm:$0xff] %v701
        %725 = vst [vmem:[%s711 + $0x68] sm:$0xff] %v703
        %726 = vst [vmem:[%s711 + $0x70] sm:$0xff] %v706
        %727 = vst [vmem:[%s711 + $0x78] sm:$0xff] %v708
        %v728 = vpack.c.bf16 %v673, %v671
        %v729 = vpack.c.bf16 %v678, %v676
        %v730 = vpack.c.bf16 %v683, %v681
        %v731 = vpack.c.bf16 %v688, %v686
        %v732 = vpack.c.bf16 %v693, %v691
        %v733 = vpack.c.bf16 %v698, %v696
        %v734 = vpack.c.bf16 %v703, %v701
        %v735 = vpack.c.bf16 %v708, %v706
        %v736 = vld [vmem:[#allocation10] sm:$0xf]
        %v737 = vld [vmem:[#allocation10 + $0x4] sm:$0xf]
        %v738 = vld [vmem:[#allocation10 + $0x8] sm:$0xf]
        %v739 = vld [vmem:[#allocation10 + $0xc] sm:$0xf]
        %v740 = vld [vmem:[#allocation10 + $0x10] sm:$0xf]
        %v741 = vld [vmem:[#allocation10 + $0x14] sm:$0xf]
        %v742 = vld [vmem:[#allocation10 + $0x18] sm:$0xf]
        %v743 = vld [vmem:[#allocation10 + $0x1c] sm:$0xf]
        %v744 = vld [vmem:[#allocation10 + $0x20] sm:$0xf]
        %v745 = vld [vmem:[#allocation10 + $0x24] sm:$0xf]
        %v746 = vld [vmem:[#allocation10 + $0x28] sm:$0xf]
        %v747 = vld [vmem:[#allocation10 + $0x2c] sm:$0xf]
        %v748 = vld [vmem:[#allocation10 + $0x30] sm:$0xf]
        %v749 = vld [vmem:[#allocation10 + $0x34] sm:$0xf]
        %v750 = vld [vmem:[#allocation10 + $0x38] sm:$0xf]
        %v751 = vld [vmem:[#allocation10 + $0x3c] sm:$0xf]
        %v752 = vld [vmem:[%s4] sm:$0x1]
        %v754 = vperm.slane %v752, 0
        %v772 = vunpack.c.l.b16 %v736
        %v773 = vunpack.c.l.b16 %v737
        %v774 = vunpack.c.l.b16 %v738
        %v775 = vunpack.c.l.b16 %v739
        %v776 = vunpack.c.l.b16 %v740
        %v777 = vunpack.c.l.b16 %v741
        %v778 = vunpack.c.l.b16 %v742
        %v779 = vunpack.c.l.b16 %v743
        %v780 = vunpack.c.l.b16 %v744
        %v781 = vunpack.c.l.b16 %v745
        %v782 = vunpack.c.l.b16 %v746
        %v783 = vunpack.c.l.b16 %v747
        %v784 = vunpack.c.l.b16 %v748
        %v785 = vunpack.c.l.b16 %v749
        %v786 = vunpack.c.l.b16 %v750
        %v787 = vunpack.c.l.b16 %v751
        %v788 = vpack.c.b16 %v773, %v772
        %v789 = vpack.c.b16 %v775, %v774
        %v790 = vpack.c.b16 %v777, %v776
        %v791 = vpack.c.b16 %v779, %v778
        %v792 = vpack.c.b16 %v781, %v780
        %v793 = vpack.c.b16 %v783, %v782
        %v794 = vpack.c.b16 %v785, %v784
        %v795 = vpack.c.b16 %v787, %v786
        %804 = vmatpush.bf16.msra.mxu0 %v795
        %805 = vmatpush.bf16.msra.mxu0 %v794
        %806 = vmatpush.bf16.msra.mxu0 %v793
        %807 = vmatpush.bf16.msra.mxu0 %v792
        %808 = vmatpush.bf16.msra.mxu0 %v791
        %809 = vmatpush.bf16.msra.mxu0 %v790
        %810 = vmatpush.bf16.msra.mxu0 %v789
        %811 = vmatpush.bf16.msra.mxu0 %v788
        %812 = vmatmul.bf16.gmra.mxu0 %v728
        %v813 = vpop.f32.mrf.mxu0
        %v814 = vadd.f32 %v754, %v813
        %v815 = vpop.f32.mrf.mxu0
        %v816 = vadd.f32 %v754, %v815
        %817 = vmatmul.bf16.gmra.mxu0 %v729
        %v818 = vpop.f32.mrf.mxu0
        %v819 = vadd.f32 %v754, %v818
        %v820 = vpop.f32.mrf.mxu0
        %v821 = vadd.f32 %v754, %v820
        %822 = vmatmul.bf16.gmra.mxu0 %v730
        %v823 = vpop.f32.mrf.mxu0
        %v824 = vadd.f32 %v754, %v823
        %v825 = vpop.f32.mrf.mxu0
        %v826 = vadd.f32 %v754, %v825
        %827 = vmatmul.bf16.gmra.mxu0 %v731
        %v828 = vpop.f32.mrf.mxu0
        %v829 = vadd.f32 %v754, %v828
        %v830 = vpop.f32.mrf.mxu0
        %v831 = vadd.f32 %v754, %v830
        %832 = vmatmul.bf16.gmra.mxu0 %v732
        %v833 = vpop.f32.mrf.mxu0
        %v834 = vadd.f32 %v754, %v833
        %v835 = vpop.f32.mrf.mxu0
        %v836 = vadd.f32 %v754, %v835
        %837 = vmatmul.bf16.gmra.mxu0 %v733
        %v838 = vpop.f32.mrf.mxu0
        %v839 = vadd.f32 %v754, %v838
        %v840 = vpop.f32.mrf.mxu0
        %v841 = vadd.f32 %v754, %v840
        %842 = vmatmul.bf16.gmra.mxu0 %v734
        %v843 = vpop.f32.mrf.mxu0
        %v844 = vadd.f32 %v754, %v843
        %v845 = vpop.f32.mrf.mxu0
        %v846 = vadd.f32 %v754, %v845
        %847 = vmatmul.bf16.gmra.mxu0 %v735
        %v848 = vpop.f32.mrf.mxu0
        %v849 = vadd.f32 %v754, %v848
        %v850 = vpop.f32.mrf.mxu0
        %v851 = vadd.f32 %v754, %v850
        %852 = vdwg.mxu0
        %v853 = vtanh.pop %v814
        %v854 = vtanh.pop %v816
        %v855 = vtanh.pop %v819
        %v856 = vtanh.pop %v821
        %v857 = vtanh.pop %v824
        %v858 = vtanh.pop %v826
        %v859 = vtanh.pop %v829
        %v860 = vtanh.pop %v831
        %v861 = vtanh.pop %v834
        %v862 = vtanh.pop %v836
        %v863 = vtanh.pop %v839
        %v864 = vtanh.pop %v841
        %v865 = vtanh.pop %v844
        %v866 = vtanh.pop %v846
        %v867 = vtanh.pop %v849
        %v868 = vtanh.pop %v851
        %v869 = vld [vmem:[%s5] sm:$0x1]
        %v871 = vperm.slane %v869, 0
        %v873 = vmul.f32 %v853, %v871
        %v874 = vmul.f32 %v854, %v871
        %v875 = vmul.f32 %v855, %v871
        %v876 = vmul.f32 %v856, %v871
        %v877 = vmul.f32 %v857, %v871
        %v878 = vmul.f32 %v858, %v871
        %v879 = vmul.f32 %v859, %v871
        %v880 = vmul.f32 %v860, %v871
        %v881 = vmul.f32 %v861, %v871
        %v882 = vmul.f32 %v862, %v871
        %v883 = vmul.f32 %v863, %v871
        %v884 = vmul.f32 %v864, %v871
        %v885 = vmul.f32 %v865, %v871
        %v886 = vmul.f32 %v866, %v871
        %v887 = vmul.f32 %v867, %v871
        %v888 = vmul.f32 %v868, %v871
        %889 = vadd.xlane.f32.xlu0 %v873
        %v890 = vpop.xlane.xlu0 %889
        %891 = vadd.xlane.f32.xlu0 %v874
        %v892 = vpop.xlane.xlu0 %891
        %893 = vadd.xlane.f32.xlu0 %v875
        %v894 = vpop.xlane.xlu0 %893
        %895 = vadd.xlane.f32.xlu0 %v876
        %v896 = vpop.xlane.xlu0 %895
        %897 = vadd.xlane.f32.xlu0 %v877
        %v898 = vpop.xlane.xlu0 %897
        %899 = vadd.xlane.f32.xlu0 %v878
        %v900 = vpop.xlane.xlu0 %899
        %901 = vadd.xlane.f32.xlu0 %v879
        %v902 = vpop.xlane.xlu0 %901
        %903 = vadd.xlane.f32.xlu0 %v880
        %v904 = vpop.xlane.xlu0 %903
        %905 = vadd.xlane.f32.xlu0 %v881
        %v906 = vpop.xlane.xlu0 %905
        %907 = vadd.xlane.f32.xlu0 %v882
        %v908 = vpop.xlane.xlu0 %907
        %909 = vadd.xlane.f32.xlu0 %v883
        %v910 = vpop.xlane.xlu0 %909
        %911 = vadd.xlane.f32.xlu0 %v884
        %v912 = vpop.xlane.xlu0 %911
        %913 = vadd.xlane.f32.xlu0 %v885
        %v914 = vpop.xlane.xlu0 %913
        %915 = vadd.xlane.f32.xlu0 %v886
        %v916 = vpop.xlane.xlu0 %915
        %917 = vadd.xlane.f32.xlu0 %v887
        %v918 = vpop.xlane.xlu0 %917
        %919 = vadd.xlane.f32.xlu0 %v888
        %v920 = vpop.xlane.xlu0 %919
        %s921 = scalar_lea.vmem [#allocation3], %s710
        %vm922 = vcmask 7168
        %923 = vst.msk [vmem:[%s921] sm:$0xff] %vm922, %v890
        %924 = vst.msk [vmem:[%s921 + $0x8] sm:$0xff] %vm922, %v892
        %925 = vst.msk [vmem:[%s921 + $0x10] sm:$0xff] %vm922, %v894
        %926 = vst.msk [vmem:[%s921 + $0x18] sm:$0xff] %vm922, %v896
        %927 = vst.msk [vmem:[%s921 + $0x20] sm:$0xff] %vm922, %v898
        %928 = vst.msk [vmem:[%s921 + $0x28] sm:$0xff] %vm922, %v900
        %929 = vst.msk [vmem:[%s921 + $0x30] sm:$0xff] %vm922, %v902
        %930 = vst.msk [vmem:[%s921 + $0x38] sm:$0xff] %vm922, %v904
        %931 = vst.msk [vmem:[%s921 + $0x40] sm:$0xff] %vm922, %v906
        %932 = vst.msk [vmem:[%s921 + $0x48] sm:$0xff] %vm922, %v908
        %933 = vst.msk [vmem:[%s921 + $0x50] sm:$0xff] %vm922, %v910
        %934 = vst.msk [vmem:[%s921 + $0x58] sm:$0xff] %vm922, %v912
        %935 = vst.msk [vmem:[%s921 + $0x60] sm:$0xff] %vm922, %v914
        %936 = vst.msk [vmem:[%s921 + $0x68] sm:$0xff] %vm922, %v916
        %937 = vst.msk [vmem:[%s921 + $0x70] sm:$0xff] %vm922, %v918
        %938 = vst.msk [vmem:[%s921 + $0x78] sm:$0xff] %vm922, %v920
        %p939 = scmp.eq.s32.totalorder %s27, 2
        // Predicated region
        $region69: #{tpu_custom_call.1} parent=51 // pred_check
          %p940 = pneg %p939
        $region70: #{tpu_custom_call.1} parent=51 // pred_check_branch
          %942 = sbr.rel (%p940) target = $region72
        $region71: #{tpu_custom_call.1} parent=51 // pred_region
          %v943 = vld [vmem:[#allocation3] sm:$0xff]
          %v944 = vld [vmem:[#allocation3 + $0x8] sm:$0xff]
          %v945 = vld [vmem:[#allocation3 + $0x10] sm:$0xff]
          %v946 = vld [vmem:[#allocation3 + $0x18] sm:$0xff]
          %v947 = vld [vmem:[#allocation3 + $0x20] sm:$0xff]
          %v948 = vld [vmem:[#allocation3 + $0x28] sm:$0xff]
          %v949 = vld [vmem:[#allocation3 + $0x30] sm:$0xff]
          %v950 = vld [vmem:[#allocation3 + $0x38] sm:$0xff]
          %v951 = vld [vmem:[#allocation3 + $0x40] sm:$0xff]
          %v952 = vld [vmem:[#allocation3 + $0x48] sm:$0xff]
          %v953 = vld [vmem:[#allocation3 + $0x50] sm:$0xff]
          %v954 = vld [vmem:[#allocation3 + $0x58] sm:$0xff]
          %v955 = vld [vmem:[#allocation3 + $0x60] sm:$0xff]
          %v956 = vld [vmem:[#allocation3 + $0x68] sm:$0xff]
          %v957 = vld [vmem:[#allocation3 + $0x70] sm:$0xff]
          %v958 = vld [vmem:[#allocation3 + $0x78] sm:$0xff]
          %v959 = vsel %vm922, %v943, 0.0
          %v960 = vsel %vm922, %v944, 0.0
          %v961 = vadd.f32 %v959, %v960
          %v962 = vsel %vm922, %v945, 0.0
          %v963 = vadd.f32 %v961, %v962
          %v964 = vsel %vm922, %v946, 0.0
          %v965 = vadd.f32 %v963, %v964
          %v966 = vsel %vm922, %v947, 0.0
          %v967 = vadd.f32 %v965, %v966
          %v968 = vsel %vm922, %v948, 0.0
          %v969 = vadd.f32 %v967, %v968
          %v970 = vsel %vm922, %v949, 0.0
          %v971 = vadd.f32 %v969, %v970
          %v972 = vsel %vm922, %v950, 0.0
          %v973 = vadd.f32 %v971, %v972
          %v974 = vsel %vm922, %v951, 0.0
          %v975 = vadd.f32 %v973, %v974
          %v976 = vsel %vm922, %v952, 0.0
          %v977 = vadd.f32 %v975, %v976
          %v978 = vsel %vm922, %v953, 0.0
          %v979 = vadd.f32 %v977, %v978
          %v980 = vsel %vm922, %v954, 0.0
          %v981 = vadd.f32 %v979, %v980
          %v982 = vsel %vm922, %v955, 0.0
          %v983 = vadd.f32 %v981, %v982
          %v984 = vsel %vm922, %v956, 0.0
          %v985 = vadd.f32 %v983, %v984
          %v986 = vsel %vm922, %v957, 0.0
          %v987 = vadd.f32 %v985, %v986
          %v988 = vsel %vm922, %v958, 0.0
          %v989 = vadd.f32 %v987, %v988
          %v990 = vrot.slane %v989, 4
          %v991 = vadd.f32 %v989, %v990
          %v992 = vrot.slane %v991, 2
          %v993 = vadd.f32 %v991, %v992
          %v994 = vrot.slane %v993, 1
          %v995 = vadd.f32 %v993, %v994
          %v996 = vrcp.pop 128.0
          %v997 = vmul.f32 128.0, %v996
          %v998 = vsub.f32 1.0, %v997
          %v999 = vmul.f32 %v996, %v998
          %v1000 = vadd.f32 %v996, %v999
          %vm1001 = vweird.f32 %v996
          %v1002 = vsel %vm1001, %v996, %v1000
          %v1003 = vmul.f32 %v995, %v1002
          %s1004 = scalar_lea.vmem [#allocation3], 128
          %v1005 = vld [vmem:[%s1004] sm:$0xff]
          %v1006 = vld [vmem:[%s1004 + $0x8] sm:$0xff]
          %v1007 = vld [vmem:[%s1004 + $0x10] sm:$0xff]
          %v1008 = vld [vmem:[%s1004 + $0x18] sm:$0xff]
          %v1009 = vld [vmem:[%s1004 + $0x20] sm:$0xff]
          %v1010 = vld [vmem:[%s1004 + $0x28] sm:$0xff]
          %v1011 = vld [vmem:[%s1004 + $0x30] sm:$0xff]
          %v1012 = vld [vmem:[%s1004 + $0x38] sm:$0xff]
          %v1013 = vld [vmem:[%s1004 + $0x40] sm:$0xff]
          %v1014 = vld [vmem:[%s1004 + $0x48] sm:$0xff]
          %v1015 = vld [vmem:[%s1004 + $0x50] sm:$0xff]
          %v1016 = vld [vmem:[%s1004 + $0x58] sm:$0xff]
          %v1017 = vld [vmem:[%s1004 + $0x60] sm:$0xff]
          %v1018 = vld [vmem:[%s1004 + $0x68] sm:$0xff]
          %v1019 = vld [vmem:[%s1004 + $0x70] sm:$0xff]
          %v1020 = vld [vmem:[%s1004 + $0x78] sm:$0xff]
          %v1021 = vsel %vm922, %v1005, 0.0
          %v1022 = vsel %vm922, %v1006, 0.0
          %v1023 = vadd.f32 %v1021, %v1022
          %v1024 = vsel %vm922, %v1007, 0.0
          %v1025 = vadd.f32 %v1023, %v1024
          %v1026 = vsel %vm922, %v1008, 0.0
          %v1027 = vadd.f32 %v1025, %v1026
          %v1028 = vsel %vm922, %v1009, 0.0
          %v1029 = vadd.f32 %v1027, %v1028
          %v1030 = vsel %vm922, %v1010, 0.0
          %v1031 = vadd.f32 %v1029, %v1030
          %v1032 = vsel %vm922, %v1011, 0.0
          %v1033 = vadd.f32 %v1031, %v1032
          %v1034 = vsel %vm922, %v1012, 0.0
          %v1035 = vadd.f32 %v1033, %v1034
          %v1036 = vsel %vm922, %v1013, 0.0
          %v1037 = vadd.f32 %v1035, %v1036
          %v1038 = vsel %vm922, %v1014, 0.0
          %v1039 = vadd.f32 %v1037, %v1038
          %v1040 = vsel %vm922, %v1015, 0.0
          %v1041 = vadd.f32 %v1039, %v1040
          %v1042 = vsel %vm922, %v1016, 0.0
          %v1043 = vadd.f32 %v1041, %v1042
          %v1044 = vsel %vm922, %v1017, 0.0
          %v1045 = vadd.f32 %v1043, %v1044
          %v1046 = vsel %vm922, %v1018, 0.0
          %v1047 = vadd.f32 %v1045, %v1046
          %v1048 = vsel %vm922, %v1019, 0.0
          %v1049 = vadd.f32 %v1047, %v1048
          %v1050 = vsel %vm922, %v1020, 0.0
          %v1051 = vadd.f32 %v1049, %v1050
          %v1052 = vrot.slane %v1051, 4
          %v1053 = vadd.f32 %v1051, %v1052
          %v1054 = vrot.slane %v1053, 2
          %v1055 = vadd.f32 %v1053, %v1054
          %v1056 = vrot.slane %v1055, 1
          %v1057 = vadd.f32 %v1055, %v1056
          %v1058 = vmul.f32 %v1057, %v1002
          %s1059 = scalar_lea.vmem [#allocation3], 256
          %v1060 = vld [vmem:[%s1059] sm:$0xff]
          %v1061 = vld [vmem:[%s1059 + $0x8] sm:$0xff]
          %v1062 = vld [vmem:[%s1059 + $0x10] sm:$0xff]
          %v1063 = vld [vmem:[%s1059 + $0x18] sm:$0xff]
          %v1064 = vld [vmem:[%s1059 + $0x20] sm:$0xff]
          %v1065 = vld [vmem:[%s1059 + $0x28] sm:$0xff]
          %v1066 = vld [vmem:[%s1059 + $0x30] sm:$0xff]
          %v1067 = vld [vmem:[%s1059 + $0x38] sm:$0xff]
          %v1068 = vld [vmem:[%s1059 + $0x40] sm:$0xff]
          %v1069 = vld [vmem:[%s1059 + $0x48] sm:$0xff]
          %v1070 = vld [vmem:[%s1059 + $0x50] sm:$0xff]
          %v1071 = vld [vmem:[%s1059 + $0x58] sm:$0xff]
          %v1072 = vld [vmem:[%s1059 + $0x60] sm:$0xff]
          %v1073 = vld [vmem:[%s1059 + $0x68] sm:$0xff]
          %v1074 = vld [vmem:[%s1059 + $0x70] sm:$0xff]
          %v1075 = vld [vmem:[%s1059 + $0x78] sm:$0xff]
          %v1076 = vsel %vm922, %v1060, 0.0
          %v1077 = vsel %vm922, %v1061, 0.0
          %v1078 = vadd.f32 %v1076, %v1077
          %v1079 = vsel %vm922, %v1062, 0.0
          %v1080 = vadd.f32 %v1078, %v1079
          %v1081 = vsel %vm922, %v1063, 0.0
          %v1082 = vadd.f32 %v1080, %v1081
          %v1083 = vsel %vm922, %v1064, 0.0
          %v1084 = vadd.f32 %v1082, %v1083
          %v1085 = vsel %vm922, %v1065, 0.0
          %v1086 = vadd.f32 %v1084, %v1085
          %v1087 = vsel %vm922, %v1066, 0.0
          %v1088 = vadd.f32 %v1086, %v1087
          %v1089 = vsel %vm922, %v1067, 0.0
          %v1090 = vadd.f32 %v1088, %v1089
          %v1091 = vsel %vm922, %v1068, 0.0
          %v1092 = vadd.f32 %v1090, %v1091
          %v1093 = vsel %vm922, %v1069, 0.0
          %v1094 = vadd.f32 %v1092, %v1093
          %v1095 = vsel %vm922, %v1070, 0.0
          %v1096 = vadd.f32 %v1094, %v1095
          %v1097 = vsel %vm922, %v1071, 0.0
          %v1098 = vadd.f32 %v1096, %v1097
          %v1099 = vsel %vm922, %v1072, 0.0
          %v1100 = vadd.f32 %v1098, %v1099
          %v1101 = vsel %vm922, %v1073, 0.0
          %v1102 = vadd.f32 %v1100, %v1101
          %v1103 = vsel %vm922, %v1074, 0.0
          %v1104 = vadd.f32 %v1102, %v1103
          %v1105 = vsel %vm922, %v1075, 0.0
          %v1106 = vadd.f32 %v1104, %v1105
          %v1107 = vrot.slane %v1106, 4
          %v1108 = vadd.f32 %v1106, %v1107
          %v1109 = vrot.slane %v1108, 2
          %v1110 = vadd.f32 %v1108, %v1109
          %v1111 = vrot.slane %v1110, 1
          %v1112 = vadd.f32 %v1110, %v1111
          %v1113 = vmul.f32 %v1112, %v1002
          %v1114 = vmax.f32 %v1003, %v1058
          %v1115 = vmax.f32 %v1114, %v1113
          %v1116 = vsub.f32 %v1003, %v1115
          %v1117 = vmul.f32 %v1116, 1.442695
          %v1118 = vpow.pop %v1117
          %v1119 = vsub.f32 %v1058, %v1115
          %v1120 = vmul.f32 %v1119, 1.442695
          %v1121 = vpow.pop %v1120
          %v1122 = vsub.f32 %v1113, %v1115
          %v1123 = vmul.f32 %v1122, 1.442695
          %v1124 = vpow.pop %v1123
          %v1125 = vadd.f32 %v1118, %v1121
          %v1126 = vadd.f32 %v1125, %v1124
          %v1127 = vrcp.pop %v1126
          %v1128 = vmul.f32 %v1118, %v1127
          %v1129 = vld [vmem:[#allocation2] sm:$0xff]
          %v1130 = vld [vmem:[#allocation2 + $0x8] sm:$0xff]
          %v1131 = vld [vmem:[#allocation2 + $0x10] sm:$0xff]
          %v1132 = vld [vmem:[#allocation2 + $0x18] sm:$0xff]
          %v1133 = vld [vmem:[#allocation2 + $0x20] sm:$0xff]
          %v1134 = vld [vmem:[#allocation2 + $0x28] sm:$0xff]
          %v1135 = vld [vmem:[#allocation2 + $0x30] sm:$0xff]
          %v1136 = vld [vmem:[#allocation2 + $0x38] sm:$0xff]
          %v1137 = vld [vmem:[#allocation2 + $0x40] sm:$0xff]
          %v1138 = vld [vmem:[#allocation2 + $0x48] sm:$0xff]
          %v1139 = vld [vmem:[#allocation2 + $0x50] sm:$0xff]
          %v1140 = vld [vmem:[#allocation2 + $0x58] sm:$0xff]
          %v1141 = vld [vmem:[#allocation2 + $0x60] sm:$0xff]
          %v1142 = vld [vmem:[#allocation2 + $0x68] sm:$0xff]
          %v1143 = vld [vmem:[#allocation2 + $0x70] sm:$0xff]
          %v1144 = vld [vmem:[#allocation2 + $0x78] sm:$0xff]
          %1146 = vset.pattern.permute.xlu0 0
          %1147 = vperm.xlu0 %1146, %v1128
          %v1148 = vpop.permute.xlu0 %1147
          %v1150 = vmul.f32 %v1148, %v1129
          %v1151 = vmul.f32 %v1148, %v1130
          %v1152 = vmul.f32 %v1148, %v1131
          %v1153 = vmul.f32 %v1148, %v1132
          %v1154 = vmul.f32 %v1148, %v1133
          %v1155 = vmul.f32 %v1148, %v1134
          %v1156 = vmul.f32 %v1148, %v1135
          %v1157 = vmul.f32 %v1148, %v1136
          %v1158 = vmul.f32 %v1148, %v1137
          %v1159 = vmul.f32 %v1148, %v1138
          %v1160 = vmul.f32 %v1148, %v1139
          %v1161 = vmul.f32 %v1148, %v1140
          %v1162 = vmul.f32 %v1148, %v1141
          %v1163 = vmul.f32 %v1148, %v1142
          %v1164 = vmul.f32 %v1148, %v1143
          %v1165 = vmul.f32 %v1148, %v1144
          %v1166 = vmul.f32 %v1121, %v1127
          %s1167 = scalar_lea.vmem [#allocation2], 128
          %v1168 = vld [vmem:[%s1167] sm:$0xff]
          %v1169 = vld [vmem:[%s1167 + $0x8] sm:$0xff]
          %v1170 = vld [vmem:[%s1167 + $0x10] sm:$0xff]
          %v1171 = vld [vmem:[%s1167 + $0x18] sm:$0xff]
          %v1172 = vld [vmem:[%s1167 + $0x20] sm:$0xff]
          %v1173 = vld [vmem:[%s1167 + $0x28] sm:$0xff]
          %v1174 = vld [vmem:[%s1167 + $0x30] sm:$0xff]
          %v1175 = vld [vmem:[%s1167 + $0x38] sm:$0xff]
          %v1176 = vld [vmem:[%s1167 + $0x40] sm:$0xff]
          %v1177 = vld [vmem:[%s1167 + $0x48] sm:$0xff]
          %v1178 = vld [vmem:[%s1167 + $0x50] sm:$0xff]
          %v1179 = vld [vmem:[%s1167 + $0x58] sm:$0xff]
          %v1180 = vld [vmem:[%s1167 + $0x60] sm:$0xff]
          %v1181 = vld [vmem:[%s1167 + $0x68] sm:$0xff]
          %v1182 = vld [vmem:[%s1167 + $0x70] sm:$0xff]
          %v1183 = vld [vmem:[%s1167 + $0x78] sm:$0xff]
          %1185 = vset.pattern.permute.xlu0 0
          %1186 = vperm.xlu0 %1185, %v1166
          %v1187 = vpop.permute.xlu0 %1186
          %v1189 = vmul.f32 %v1187, %v1168
          %v1190 = vmul.f32 %v1187, %v1169
          %v1191 = vmul.f32 %v1187, %v1170
          %v1192 = vmul.f32 %v1187, %v1171
          %v1193 = vmul.f32 %v1187, %v1172
          %v1194 = vmul.f32 %v1187, %v1173
          %v1195 = vmul.f32 %v1187, %v1174
          %v1196 = vmul.f32 %v1187, %v1175
          %v1197 = vmul.f32 %v1187, %v1176
          %v1198 = vmul.f32 %v1187, %v1177
          %v1199 = vmul.f32 %v1187, %v1178
          %v1200 = vmul.f32 %v1187, %v1179
          %v1201 = vmul.f32 %v1187, %v1180
          %v1202 = vmul.f32 %v1187, %v1181
          %v1203 = vmul.f32 %v1187, %v1182
          %v1204 = vmul.f32 %v1187, %v1183
          %v1205 = vadd.f32 %v1150, %v1189
          %v1206 = vadd.f32 %v1151, %v1190
          %v1207 = vadd.f32 %v1152, %v1191
          %v1208 = vadd.f32 %v1153, %v1192
          %v1209 = vadd.f32 %v1154, %v1193
          %v1210 = vadd.f32 %v1155, %v1194
          %v1211 = vadd.f32 %v1156, %v1195
          %v1212 = vadd.f32 %v1157, %v1196
          %v1213 = vadd.f32 %v1158, %v1197
          %v1214 = vadd.f32 %v1159, %v1198
          %v1215 = vadd.f32 %v1160, %v1199
          %v1216 = vadd.f32 %v1161, %v1200
          %v1217 = vadd.f32 %v1162, %v1201
          %v1218 = vadd.f32 %v1163, %v1202
          %v1219 = vadd.f32 %v1164, %v1203
          %v1220 = vadd.f32 %v1165, %v1204
          %v1221 = vmul.f32 %v1124, %v1127
          %s1222 = scalar_lea.vmem [#allocation2], 256
          %v1223 = vld [vmem:[%s1222] sm:$0xff]
          %v1224 = vld [vmem:[%s1222 + $0x8] sm:$0xff]
          %v1225 = vld [vmem:[%s1222 + $0x10] sm:$0xff]
          %v1226 = vld [vmem:[%s1222 + $0x18] sm:$0xff]
          %v1227 = vld [vmem:[%s1222 + $0x20] sm:$0xff]
          %v1228 = vld [vmem:[%s1222 + $0x28] sm:$0xff]
          %v1229 = vld [vmem:[%s1222 + $0x30] sm:$0xff]
          %v1230 = vld [vmem:[%s1222 + $0x38] sm:$0xff]
          %v1231 = vld [vmem:[%s1222 + $0x40] sm:$0xff]
          %v1232 = vld [vmem:[%s1222 + $0x48] sm:$0xff]
          %v1233 = vld [vmem:[%s1222 + $0x50] sm:$0xff]
          %v1234 = vld [vmem:[%s1222 + $0x58] sm:$0xff]
          %v1235 = vld [vmem:[%s1222 + $0x60] sm:$0xff]
          %v1236 = vld [vmem:[%s1222 + $0x68] sm:$0xff]
          %v1237 = vld [vmem:[%s1222 + $0x70] sm:$0xff]
          %v1238 = vld [vmem:[%s1222 + $0x78] sm:$0xff]
          %1240 = vset.pattern.permute.xlu0 0
          %1241 = vperm.xlu0 %1240, %v1221
          %v1242 = vpop.permute.xlu0 %1241
          %v1244 = vmul.f32 %v1242, %v1223
          %v1245 = vmul.f32 %v1242, %v1224
          %v1246 = vmul.f32 %v1242, %v1225
          %v1247 = vmul.f32 %v1242, %v1226
          %v1248 = vmul.f32 %v1242, %v1227
          %v1249 = vmul.f32 %v1242, %v1228
          %v1250 = vmul.f32 %v1242, %v1229
          %v1251 = vmul.f32 %v1242, %v1230
          %v1252 = vmul.f32 %v1242, %v1231
          %v1253 = vmul.f32 %v1242, %v1232
          %v1254 = vmul.f32 %v1242, %v1233
          %v1255 = vmul.f32 %v1242, %v1234
          %v1256 = vmul.f32 %v1242, %v1235
          %v1257 = vmul.f32 %v1242, %v1236
          %v1258 = vmul.f32 %v1242, %v1237
          %v1259 = vmul.f32 %v1242, %v1238
          %v1260 = vadd.f32 %v1205, %v1244
          %v1261 = vadd.f32 %v1206, %v1245
          %v1262 = vadd.f32 %v1207, %v1246
          %v1263 = vadd.f32 %v1208, %v1247
          %v1264 = vadd.f32 %v1209, %v1248
          %v1265 = vadd.f32 %v1210, %v1249
          %v1266 = vadd.f32 %v1211, %v1250
          %v1267 = vadd.f32 %v1212, %v1251
          %v1268 = vadd.f32 %v1213, %v1252
          %v1269 = vadd.f32 %v1214, %v1253
          %v1270 = vadd.f32 %v1215, %v1254
          %v1271 = vadd.f32 %v1216, %v1255
          %v1272 = vadd.f32 %v1217, %v1256
          %v1273 = vadd.f32 %v1218, %v1257
          %v1274 = vadd.f32 %v1219, %v1258
          %v1275 = vadd.f32 %v1220, %v1259
          %v1276 = vadd.f32 %v1260, %v1261
          %v1277 = vadd.f32 %v1276, %v1262
          %v1278 = vadd.f32 %v1277, %v1263
          %v1279 = vadd.f32 %v1278, %v1264
          %v1280 = vadd.f32 %v1279, %v1265
          %v1281 = vadd.f32 %v1280, %v1266
          %v1282 = vadd.f32 %v1281, %v1267
          %v1283 = vadd.f32 %v1282, %v1268
          %v1284 = vadd.f32 %v1283, %v1269
          %v1285 = vadd.f32 %v1284, %v1270
          %v1286 = vadd.f32 %v1285, %v1271
          %v1287 = vadd.f32 %v1286, %v1272
          %v1288 = vadd.f32 %v1287, %v1273
          %v1289 = vadd.f32 %v1288, %v1274
          %v1290 = vadd.f32 %v1289, %v1275
          %v1291 = vrot.slane %v1290, 4
          %v1292 = vadd.f32 %v1290, %v1291
          %v1293 = vrot.slane %v1292, 2
          %v1294 = vadd.f32 %v1292, %v1293
          %v1295 = vrot.slane %v1294, 1
          %v1296 = vadd.f32 %v1294, %v1295
          %v1297 = vmul.f32 %v1296, %v1002
          %v1298 = vsub.f32 %v1260, %v1297
          %v1299 = vsub.f32 %v1261, %v1297
          %v1300 = vsub.f32 %v1262, %v1297
          %v1301 = vsub.f32 %v1263, %v1297
          %v1302 = vsub.f32 %v1264, %v1297
          %v1303 = vsub.f32 %v1265, %v1297
          %v1304 = vsub.f32 %v1266, %v1297
          %v1305 = vsub.f32 %v1267, %v1297
          %v1306 = vsub.f32 %v1268, %v1297
          %v1307 = vsub.f32 %v1269, %v1297
          %v1308 = vsub.f32 %v1270, %v1297
          %v1309 = vsub.f32 %v1271, %v1297
          %v1310 = vsub.f32 %v1272, %v1297
          %v1311 = vsub.f32 %v1273, %v1297
          %v1312 = vsub.f32 %v1274, %v1297
          %v1313 = vsub.f32 %v1275, %v1297
          %v1314 = vmul.f32 %v1298, %v1298
          %v1315 = vmul.f32 %v1299, %v1299
          %v1316 = vmul.f32 %v1300, %v1300
          %v1317 = vmul.f32 %v1301, %v1301
          %v1318 = vmul.f32 %v1302, %v1302
          %v1319 = vmul.f32 %v1303, %v1303
          %v1320 = vmul.f32 %v1304, %v1304
          %v1321 = vmul.f32 %v1305, %v1305
          %v1322 = vmul.f32 %v1306, %v1306
          %v1323 = vmul.f32 %v1307, %v1307
          %v1324 = vmul.f32 %v1308, %v1308
          %v1325 = vmul.f32 %v1309, %v1309
          %v1326 = vmul.f32 %v1310, %v1310
          %v1327 = vmul.f32 %v1311, %v1311
          %v1328 = vmul.f32 %v1312, %v1312
          %v1329 = vmul.f32 %v1313, %v1313
          %v1330 = vadd.f32 %v1314, %v1315
          %v1331 = vadd.f32 %v1330, %v1316
          %v1332 = vadd.f32 %v1331, %v1317
          %v1333 = vadd.f32 %v1332, %v1318
          %v1334 = vadd.f32 %v1333, %v1319
          %v1335 = vadd.f32 %v1334, %v1320
          %v1336 = vadd.f32 %v1335, %v1321
          %v1337 = vadd.f32 %v1336, %v1322
          %v1338 = vadd.f32 %v1337, %v1323
          %v1339 = vadd.f32 %v1338, %v1324
          %v1340 = vadd.f32 %v1339, %v1325
          %v1341 = vadd.f32 %v1340, %v1326
          %v1342 = vadd.f32 %v1341, %v1327
          %v1343 = vadd.f32 %v1342, %v1328
          %v1344 = vadd.f32 %v1343, %v1329
          %v1345 = vrot.slane %v1344, 4
          %v1346 = vadd.f32 %v1344, %v1345
          %v1347 = vrot.slane %v1346, 2
          %v1348 = vadd.f32 %v1346, %v1347
          %v1349 = vrot.slane %v1348, 1
          %v1350 = vadd.f32 %v1348, %v1349
          %v1351 = vmul.f32 %v1350, %v1002
          %v1352 = vadd.f32 %v1351, 1e-05
          %v1353 = vrsqrt.pop %v1352
          %v1354 = vmul.f32 %v1353, %v1352
          %v1355 = vmul.f32 %v1354, %v1353
          %v1356 = vmul.f32 0.5, %v1355
          %v1357 = vsub.f32 1.5, %v1356
          %v1358 = vmul.f32 %v1353, %v1357
          %vm1359 = vweird.f32 %v1352
          %vm1360 = vweird.f32 %v1353
          %vm1361 = vmor %vm1359, %vm1360
          %v1362 = vsel %vm1361, %v1353, %v1358
          %v1363 = vmul.f32 %v1298, %v1362
          %v1364 = vmul.f32 %v1299, %v1362
          %v1365 = vmul.f32 %v1300, %v1362
          %v1366 = vmul.f32 %v1301, %v1362
          %v1367 = vmul.f32 %v1302, %v1362
          %v1368 = vmul.f32 %v1303, %v1362
          %v1369 = vmul.f32 %v1304, %v1362
          %v1370 = vmul.f32 %v1305, %v1362
          %v1371 = vmul.f32 %v1306, %v1362
          %v1372 = vmul.f32 %v1307, %v1362
          %v1373 = vmul.f32 %v1308, %v1362
          %v1374 = vmul.f32 %v1309, %v1362
          %v1375 = vmul.f32 %v1310, %v1362
          %v1376 = vmul.f32 %v1311, %v1362
          %v1377 = vmul.f32 %v1312, %v1362
          %v1378 = vmul.f32 %v1313, %v1362
          %v1379 = vld [vmem:[%s6] sm:$0x1]
          %v1381 = vperm.slane %v1379, 0
          %v1383 = vmul.f32 %v1363, %v1381
          %v1384 = vmul.f32 %v1364, %v1381
          %v1385 = vmul.f32 %v1365, %v1381
          %v1386 = vmul.f32 %v1366, %v1381
          %v1387 = vmul.f32 %v1367, %v1381
          %v1388 = vmul.f32 %v1368, %v1381
          %v1389 = vmul.f32 %v1369, %v1381
          %v1390 = vmul.f32 %v1370, %v1381
          %v1391 = vmul.f32 %v1371, %v1381
          %v1392 = vmul.f32 %v1372, %v1381
          %v1393 = vmul.f32 %v1373, %v1381
          %v1394 = vmul.f32 %v1374, %v1381
          %v1395 = vmul.f32 %v1375, %v1381
          %v1396 = vmul.f32 %v1376, %v1381
          %v1397 = vmul.f32 %v1377, %v1381
          %v1398 = vmul.f32 %v1378, %v1381
          %v1399 = vld [vmem:[%s7] sm:$0x1]
          %v1401 = vperm.slane %v1399, 0
          %v1403 = vadd.f32 %v1383, %v1401
          %v1404 = vadd.f32 %v1384, %v1401
          %v1405 = vadd.f32 %v1385, %v1401
          %v1406 = vadd.f32 %v1386, %v1401
          %v1407 = vadd.f32 %v1387, %v1401
          %v1408 = vadd.f32 %v1388, %v1401
          %v1409 = vadd.f32 %v1389, %v1401
          %v1410 = vadd.f32 %v1390, %v1401
          %v1411 = vadd.f32 %v1391, %v1401
          %v1412 = vadd.f32 %v1392, %v1401
          %v1413 = vadd.f32 %v1393, %v1401
          %v1414 = vadd.f32 %v1394, %v1401
          %v1415 = vadd.f32 %v1395, %v1401
          %v1416 = vadd.f32 %v1396, %v1401
          %v1417 = vadd.f32 %v1397, %v1401
          %v1418 = vadd.f32 %v1398, %v1401
          %v1419 = vmax.f32 %v1403, 0.0
          %v1420 = vmax.f32 %v1404, 0.0
          %v1421 = vmax.f32 %v1405, 0.0
          %v1422 = vmax.f32 %v1406, 0.0
          %v1423 = vmax.f32 %v1407, 0.0
          %v1424 = vmax.f32 %v1408, 0.0
          %v1425 = vmax.f32 %v1409, 0.0
          %v1426 = vmax.f32 %v1410, 0.0
          %v1427 = vmax.f32 %v1411, 0.0
          %v1428 = vmax.f32 %v1412, 0.0
          %v1429 = vmax.f32 %v1413, 0.0
          %v1430 = vmax.f32 %v1414, 0.0
          %v1431 = vmax.f32 %v1415, 0.0
          %v1432 = vmax.f32 %v1416, 0.0
          %v1433 = vmax.f32 %v1417, 0.0
          %v1434 = vmax.f32 %v1418, 0.0
          %v1435 = vmul.f32 %v1419, %v1419
          %v1436 = vmul.f32 %v1420, %v1420
          %v1437 = vmul.f32 %v1421, %v1421
          %v1438 = vmul.f32 %v1422, %v1422
          %v1439 = vmul.f32 %v1423, %v1423
          %v1440 = vmul.f32 %v1424, %v1424
          %v1441 = vmul.f32 %v1425, %v1425
          %v1442 = vmul.f32 %v1426, %v1426
          %v1443 = vmul.f32 %v1427, %v1427
          %v1444 = vmul.f32 %v1428, %v1428
          %v1445 = vmul.f32 %v1429, %v1429
          %v1446 = vmul.f32 %v1430, %v1430
          %v1447 = vmul.f32 %v1431, %v1431
          %v1448 = vmul.f32 %v1432, %v1432
          %v1449 = vmul.f32 %v1433, %v1433
          %v1450 = vmul.f32 %v1434, %v1434
          %1451 = vadd.xlane.f32.xlu0 %v1435
          %v1452 = vpop.xlane.xlu0 %1451
          %1453 = vadd.xlane.f32.xlu0 %v1436
          %v1454 = vpop.xlane.xlu0 %1453
          %1455 = vadd.xlane.f32.xlu0 %v1437
          %v1456 = vpop.xlane.xlu0 %1455
          %1457 = vadd.xlane.f32.xlu0 %v1438
          %v1458 = vpop.xlane.xlu0 %1457
          %1459 = vadd.xlane.f32.xlu0 %v1439
          %v1460 = vpop.xlane.xlu0 %1459
          %1461 = vadd.xlane.f32.xlu0 %v1440
          %v1462 = vpop.xlane.xlu0 %1461
          %1463 = vadd.xlane.f32.xlu0 %v1441
          %v1464 = vpop.xlane.xlu0 %1463
          %1465 = vadd.xlane.f32.xlu0 %v1442
          %v1466 = vpop.xlane.xlu0 %1465
          %1467 = vadd.xlane.f32.xlu0 %v1443
          %v1468 = vpop.xlane.xlu0 %1467
          %1469 = vadd.xlane.f32.xlu0 %v1444
          %v1470 = vpop.xlane.xlu0 %1469
          %1471 = vadd.xlane.f32.xlu0 %v1445
          %v1472 = vpop.xlane.xlu0 %1471
          %1473 = vadd.xlane.f32.xlu0 %v1446
          %v1474 = vpop.xlane.xlu0 %1473
          %1475 = vadd.xlane.f32.xlu0 %v1447
          %v1476 = vpop.xlane.xlu0 %1475
          %1477 = vadd.xlane.f32.xlu0 %v1448
          %v1478 = vpop.xlane.xlu0 %1477
          %1479 = vadd.xlane.f32.xlu0 %v1449
          %v1480 = vpop.xlane.xlu0 %1479
          %1481 = vadd.xlane.f32.xlu0 %v1450
          %v1482 = vpop.xlane.xlu0 %1481
          %v1483 = vmax.f32 %v1452, 1e-24
          %v1484 = vmax.f32 %v1454, 1e-24
          %v1485 = vmax.f32 %v1456, 1e-24
          %v1486 = vmax.f32 %v1458, 1e-24
          %v1487 = vmax.f32 %v1460, 1e-24
          %v1488 = vmax.f32 %v1462, 1e-24
          %v1489 = vmax.f32 %v1464, 1e-24
          %v1490 = vmax.f32 %v1466, 1e-24
          %v1491 = vmax.f32 %v1468, 1e-24
          %v1492 = vmax.f32 %v1470, 1e-24
          %v1493 = vmax.f32 %v1472, 1e-24
          %v1494 = vmax.f32 %v1474, 1e-24
          %v1495 = vmax.f32 %v1476, 1e-24
          %v1496 = vmax.f32 %v1478, 1e-24
          %v1497 = vmax.f32 %v1480, 1e-24
          %v1498 = vmax.f32 %v1482, 1e-24
          %v1499 = vrsqrt.pop %v1483
          %v1500 = vmul.f32 %v1499, %v1483
          %v1501 = vmul.f32 %v1500, %v1499
          %v1502 = vmul.f32 0.5, %v1501
          %v1503 = vsub.f32 1.5, %v1502
          %v1504 = vmul.f32 %v1499, %v1503
          %vm1505 = vweird.f32 %v1483
          %vm1506 = vweird.f32 %v1499
          %vm1507 = vmor %vm1505, %vm1506
          %v1508 = vsel %vm1507, %v1499, %v1504
          %v1509 = vrsqrt.pop %v1484
          %v1510 = vmul.f32 %v1509, %v1484
          %v1511 = vmul.f32 %v1510, %v1509
          %v1512 = vmul.f32 0.5, %v1511
          %v1513 = vsub.f32 1.5, %v1512
          %v1514 = vmul.f32 %v1509, %v1513
          %vm1515 = vweird.f32 %v1484
          %vm1516 = vweird.f32 %v1509
          %vm1517 = vmor %vm1515, %vm1516
          %v1518 = vsel %vm1517, %v1509, %v1514
          %v1519 = vrsqrt.pop %v1485
          %v1520 = vmul.f32 %v1519, %v1485
          %v1521 = vmul.f32 %v1520, %v1519
          %v1522 = vmul.f32 0.5, %v1521
          %v1523 = vsub.f32 1.5, %v1522
          %v1524 = vmul.f32 %v1519, %v1523
          %vm1525 = vweird.f32 %v1485
          %vm1526 = vweird.f32 %v1519
          %vm1527 = vmor %vm1525, %vm1526
          %v1528 = vsel %vm1527, %v1519, %v1524
          %v1529 = vrsqrt.pop %v1486
          %v1530 = vmul.f32 %v1529, %v1486
          %v1531 = vmul.f32 %v1530, %v1529
          %v1532 = vmul.f32 0.5, %v1531
          %v1533 = vsub.f32 1.5, %v1532
          %v1534 = vmul.f32 %v1529, %v1533
          %vm1535 = vweird.f32 %v1486
          %vm1536 = vweird.f32 %v1529
          %vm1537 = vmor %vm1535, %vm1536
          %v1538 = vsel %vm1537, %v1529, %v1534
          %v1539 = vrsqrt.pop %v1487
          %v1540 = vmul.f32 %v1539, %v1487
          %v1541 = vmul.f32 %v1540, %v1539
          %v1542 = vmul.f32 0.5, %v1541
          %v1543 = vsub.f32 1.5, %v1542
          %v1544 = vmul.f32 %v1539, %v1543
          %vm1545 = vweird.f32 %v1487
          %vm1546 = vweird.f32 %v1539
          %vm1547 = vmor %vm1545, %vm1546
          %v1548 = vsel %vm1547, %v1539, %v1544
          %v1549 = vrsqrt.pop %v1488
          %v1550 = vmul.f32 %v1549, %v1488
          %v1551 = vmul.f32 %v1550, %v1549
          %v1552 = vmul.f32 0.5, %v1551
          %v1553 = vsub.f32 1.5, %v1552
          %v1554 = vmul.f32 %v1549, %v1553
          %vm1555 = vweird.f32 %v1488
          %vm1556 = vweird.f32 %v1549
          %vm1557 = vmor %vm1555, %vm1556
          %v1558 = vsel %vm1557, %v1549, %v1554
          %v1559 = vrsqrt.pop %v1489
          %v1560 = vmul.f32 %v1559, %v1489
          %v1561 = vmul.f32 %v1560, %v1559
          %v1562 = vmul.f32 0.5, %v1561
          %v1563 = vsub.f32 1.5, %v1562
          %v1564 = vmul.f32 %v1559, %v1563
          %vm1565 = vweird.f32 %v1489
          %vm1566 = vweird.f32 %v1559
          %vm1567 = vmor %vm1565, %vm1566
          %v1568 = vsel %vm1567, %v1559, %v1564
          %v1569 = vrsqrt.pop %v1490
          %v1570 = vmul.f32 %v1569, %v1490
          %v1571 = vmul.f32 %v1570, %v1569
          %v1572 = vmul.f32 0.5, %v1571
          %v1573 = vsub.f32 1.5, %v1572
          %v1574 = vmul.f32 %v1569, %v1573
          %vm1575 = vweird.f32 %v1490
          %vm1576 = vweird.f32 %v1569
          %vm1577 = vmor %vm1575, %vm1576
          %v1578 = vsel %vm1577, %v1569, %v1574
          %v1579 = vrsqrt.pop %v1491
          %v1580 = vmul.f32 %v1579, %v1491
          %v1581 = vmul.f32 %v1580, %v1579
          %v1582 = vmul.f32 0.5, %v1581
          %v1583 = vsub.f32 1.5, %v1582
          %v1584 = vmul.f32 %v1579, %v1583
          %vm1585 = vweird.f32 %v1491
          %vm1586 = vweird.f32 %v1579
          %vm1587 = vmor %vm1585, %vm1586
          %v1588 = vsel %vm1587, %v1579, %v1584
          %v1589 = vrsqrt.pop %v1492
          %v1590 = vmul.f32 %v1589, %v1492
          %v1591 = vmul.f32 %v1590, %v1589
          %v1592 = vmul.f32 0.5, %v1591
          %v1593 = vsub.f32 1.5, %v1592
          %v1594 = vmul.f32 %v1589, %v1593
          %vm1595 = vweird.f32 %v1492
          %vm1596 = vweird.f32 %v1589
          %vm1597 = vmor %vm1595, %vm1596
          %v1598 = vsel %vm1597, %v1589, %v1594
          %v1599 = vrsqrt.pop %v1493
          %v1600 = vmul.f32 %v1599, %v1493
          %v1601 = vmul.f32 %v1600, %v1599
          %v1602 = vmul.f32 0.5, %v1601
          %v1603 = vsub.f32 1.5, %v1602
          %v1604 = vmul.f32 %v1599, %v1603
          %vm1605 = vweird.f32 %v1493
          %vm1606 = vweird.f32 %v1599
          %vm1607 = vmor %vm1605, %vm1606
          %v1608 = vsel %vm1607, %v1599, %v1604
          %v1609 = vrsqrt.pop %v1494
          %v1610 = vmul.f32 %v1609, %v1494
          %v1611 = vmul.f32 %v1610, %v1609
          %v1612 = vmul.f32 0.5, %v1611
          %v1613 = vsub.f32 1.5, %v1612
          %v1614 = vmul.f32 %v1609, %v1613
          %vm1615 = vweird.f32 %v1494
          %vm1616 = vweird.f32 %v1609
          %vm1617 = vmor %vm1615, %vm1616
          %v1618 = vsel %vm1617, %v1609, %v1614
          %v1619 = vrsqrt.pop %v1495
          %v1620 = vmul.f32 %v1619, %v1495
          %v1621 = vmul.f32 %v1620, %v1619
          %v1622 = vmul.f32 0.5, %v1621
          %v1623 = vsub.f32 1.5, %v1622
          %v1624 = vmul.f32 %v1619, %v1623
          %vm1625 = vweird.f32 %v1495
          %vm1626 = vweird.f32 %v1619
          %vm1627 = vmor %vm1625, %vm1626
          %v1628 = vsel %vm1627, %v1619, %v1624
          %v1629 = vrsqrt.pop %v1496
          %v1630 = vmul.f32 %v1629, %v1496
          %v1631 = vmul.f32 %v1630, %v1629
          %v1632 = vmul.f32 0.5, %v1631
          %v1633 = vsub.f32 1.5, %v1632
          %v1634 = vmul.f32 %v1629, %v1633
          %vm1635 = vweird.f32 %v1496
          %vm1636 = vweird.f32 %v1629
          %vm1637 = vmor %vm1635, %vm1636
          %v1638 = vsel %vm1637, %v1629, %v1634
          %v1639 = vrsqrt.pop %v1497
          %v1640 = vmul.f32 %v1639, %v1497
          %v1641 = vmul.f32 %v1640, %v1639
          %v1642 = vmul.f32 0.5, %v1641
          %v1643 = vsub.f32 1.5, %v1642
          %v1644 = vmul.f32 %v1639, %v1643
          %vm1645 = vweird.f32 %v1497
          %vm1646 = vweird.f32 %v1639
          %vm1647 = vmor %vm1645, %vm1646
          %v1648 = vsel %vm1647, %v1639, %v1644
          %v1649 = vrsqrt.pop %v1498
          %v1650 = vmul.f32 %v1649, %v1498
          %v1651 = vmul.f32 %v1650, %v1649
          %v1652 = vmul.f32 0.5, %v1651
          %v1653 = vsub.f32 1.5, %v1652
          %v1654 = vmul.f32 %v1649, %v1653
          %vm1655 = vweird.f32 %v1498
          %vm1656 = vweird.f32 %v1649
          %vm1657 = vmor %vm1655, %vm1656
          %v1658 = vsel %vm1657, %v1649, %v1654
          %v1659 = vmul.f32 %v1419, %v1508
          %v1660 = vmul.f32 %v1420, %v1518
          %v1661 = vmul.f32 %v1421, %v1528
          %v1662 = vmul.f32 %v1422, %v1538
          %v1663 = vmul.f32 %v1423, %v1548
          %v1664 = vmul.f32 %v1424, %v1558
          %v1665 = vmul.f32 %v1425, %v1568
          %v1666 = vmul.f32 %v1426, %v1578
          %v1667 = vmul.f32 %v1427, %v1588
          %v1668 = vmul.f32 %v1428, %v1598
          %v1669 = vmul.f32 %v1429, %v1608
          %v1670 = vmul.f32 %v1430, %v1618
          %v1671 = vmul.f32 %v1431, %v1628
          %v1672 = vmul.f32 %v1432, %v1638
          %v1673 = vmul.f32 %v1433, %v1648
          %v1674 = vmul.f32 %v1434, %v1658
          %1675 = vst [vmem:[#allocation12] sm:$0xff] %v1659
          %1676 = vst [vmem:[#allocation12 + $0x8] sm:$0xff] %v1660
          %1677 = vst [vmem:[#allocation12 + $0x10] sm:$0xff] %v1661
          %1678 = vst [vmem:[#allocation12 + $0x18] sm:$0xff] %v1662
          %1679 = vst [vmem:[#allocation12 + $0x20] sm:$0xff] %v1663
          %1680 = vst [vmem:[#allocation12 + $0x28] sm:$0xff] %v1664
          %1681 = vst [vmem:[#allocation12 + $0x30] sm:$0xff] %v1665
          %1682 = vst [vmem:[#allocation12 + $0x38] sm:$0xff] %v1666
          %1683 = vst [vmem:[#allocation12 + $0x40] sm:$0xff] %v1667
          %1684 = vst [vmem:[#allocation12 + $0x48] sm:$0xff] %v1668
          %1685 = vst [vmem:[#allocation12 + $0x50] sm:$0xff] %v1669
          %1686 = vst [vmem:[#allocation12 + $0x58] sm:$0xff] %v1670
          %1687 = vst [vmem:[#allocation12 + $0x60] sm:$0xff] %v1671
          %1688 = vst [vmem:[#allocation12 + $0x68] sm:$0xff] %v1672
          %1689 = vst [vmem:[#allocation12 + $0x70] sm:$0xff] %v1673
          %1690 = vst [vmem:[#allocation12 + $0x78] sm:$0xff] %v1674
        $region72: #{tpu_custom_call.1} parent=51 // pred_fallthru
          _
        // Predicated region
        $region73: #{tpu_custom_call.1} parent=51 // pred_check
          %p1691 = pneg %p223
        $region74: #{tpu_custom_call.1} parent=51 // pred_check_branch
          %1693 = sbr.rel (%p1691) target = $region76
        $region75: #{tpu_custom_call.1} parent=51 // pred_region
          %1695 = vsyncadd [#allocation6], 0
          %s1696 = sshll.u32 [#allocation12], 4
          %s1697 = int_to_ptr.vmem [resolvable:$true] %s1696
          %s1698 = sshll.u32 %s8, 4
          %s1699 = int_to_ptr.hbm [resolvable:$true] %s1698
          %1704 = dma.vmem_to_hbm [thread:$0]  %s1697, 2048, %s1699, [#allocation6], 128, 128, 8
        $region76: #{tpu_custom_call.1} parent=51 // pred_fallthru
          _
        // Predicated region
        $region77: #{tpu_custom_call.1} parent=51 // pred_check
          %p1705 = pneg %p223
        $region78: #{tpu_custom_call.1} parent=51 // pred_check_branch
          %1707 = sbr.rel (%p1705) target = $region80
        $region79: #{tpu_custom_call.1} parent=51 // pred_region
          %1709 = dma.done [#allocation6], 2048
        $region80: #{tpu_custom_call.1} parent=51 // pred_fallthru
          _
      $region52: #{tpu_custom_call.1} parent=5 // pred_fallthru
        _
      %p1710 = scmp.le.s32.totalorder 2, %s22
      // Predicated region
      $region81: #{tpu_custom_call.1} parent=5 // pred_check
        %p1711 = pneg %p1710
      $region82: #{tpu_custom_call.1} parent=5 // pred_check_branch
        %1713 = sbr.rel (%p1711) target = $region84
      $region83: #{tpu_custom_call.1} parent=5 // pred_region
        %s1714 = ssub.s32 %s22, 2
      $region84: #{tpu_custom_call.1} parent=5 // pred_fallthru
        _
    $region6: #{tpu_custom_call.1} parent=1 // loop_footer
      %s26 = sadd.s32 1, %s22
    $region7: #{tpu_custom_call.1} parent=1 // loop_footer_branch
      %21 = sbr.rel target = $region3
    $region8: #{tpu_custom_call.1} parent=1 // loop_exit
      _
    %1715 = vsyncpa [#allocation5], 1
    %s1716 = scalar_lea.sflag [#allocation5], 1
    %1717 = vsyncpa %s1716, 1
    %1718 = vsyncpa [#allocation8], 1
    %s1719 = scalar_lea.sflag [#allocation8], 1
    %1720 = vsyncpa %s1719, 1
    %1721 = vsyncpa [#allocation11], 1
    %1722 = vsyncpa [#allocation6], 1
    %s1723 = scalar_lea.sflag [#allocation6], 1
    %1724 = vsyncpa %s1723, 1

</llo_original>
